<compile_context>
chip_gen: v7x
topology: tpu7x:2x2x1
jax: 0.10.0
libtpu: 0.0.40
codegen_flags: <defaults>
</compile_context>

<pallas_src>
import jax
import jax.numpy as jnp
from jax import lax
from jax.experimental import pallas as pl
from jax.experimental.pallas import tpu as pltpu


# ----------------------------------------------------------------------------
# helpers (glue, plain JAX)
# ----------------------------------------------------------------------------
def compute_reindexing_tensor(l, L):
    """Relative -> absolute shift reindexing mask, shape (l, l, 2L-1)."""
    x = jnp.arange(l)[:, None, None]
    i = jnp.arange(l)[None, :, None]
    r = jnp.arange(-(L - 1), L)[None, None, :]
    mask = ((i - x) == r) & (jnp.abs(i - x) <= L)
    return mask.astype(jnp.float32)


def _pick_batch_block(B, N, C):
    """Images per grid step.

    Validity: block (Bt*C, N) over array (B*C, N) needs (Bt*C) % 8 == 0 or
    Bt == B (minor dim N always equals the full extent, so any N is legal).
    Preference: keep >= 2 grid steps when B allows it (v7x has 2 TensorCores),
    then aim for >= 512 tokens per step (HBM-roofline), else take the largest.
    """
    cands = [bt for bt in range(1, B + 1)
             if B % bt == 0 and ((bt * C) % 8 == 0 or bt == B)]
    multi = [bt for bt in cands if B // bt >= 2]
    pool = multi if multi else cands
    big = [bt for bt in pool if bt * N >= 512]
    return min(big) if big else max(pool)


# ----------------------------------------------------------------------------
# Pallas kernel: one block of Bt images (channels-first, tokens on lanes)
# ----------------------------------------------------------------------------
def _sam_kernel(x_ref, w_ref, p_ref, bn_ref, o_ref):
    # x_ref  : (Bt*C, N)     NCHW-native block: channels on sublanes, tokens on lanes
    # w_ref  : (C+2*KP, C+1) fused [Wv | Wq(pad->KP) | Wk(pad->KP)]; last col = bias
    # p_ref  : (N, 2*KP)     [Ph(pad) | Pw(pad)]
    # bn_ref : (C, 4)        columns: [g*s_r, g*s_c, g*(b_r+b_c), g]
    # o_ref  : (Bt*C, N)
    qkvp, c1 = w_ref.shape
    c = c1 - 1
    n = p_ref.shape[0]
    kp = p_ref.shape[1] // 2
    bt = x_ref.shape[0] // c

    # --- loop-invariant values, hoisted once per grid step -------------------
    w = w_ref[...]                                               # (QKVp, C+1)
    wmat = w[:, :c]                                              # (QKVp, C)
    bias = jnp.broadcast_to(w[:, c:c + 1], (qkvp, n))            # fused proj bias
    bn = bn_ref[...]                                             # (C, 4)
    gs_r = bn[:, 0:1]                                            # (C, 1) gamma*s_r
    gs_c = bn[:, 1:2]                                            # (C, 1) gamma*s_c
    gbias = jnp.broadcast_to(bn[:, 2:3], (c, n))                 # gamma*(b_r+b_c)
    g_full = jnp.broadcast_to(bn[:, 3:4], (c, n))                # gamma
    pcat = p_ref[...]                                            # (N, 2*KP)

    def process_image(r0):
        xt = x_ref[pl.ds(r0, c), :]                              # (C, N)

        # fused q/k/v projection (folded eval-mode BN) + ReLU, one MXU push
        qkv = jnp.maximum(
            jnp.dot(wmat, xt, preferred_element_type=jnp.float32) + bias,
            0.0)                                                 # (QKVp, N)
        v = qkv[:c, :]                                           # (C, N)   aligned
        q = qkv[c:c + kp, :]                                     # (KP, N)  pad rows are 0
        k = qkv[c + kp:c + 2 * kp, :]                            # (KP, N)

        # softmax attention, transposed orientation: e[n, m] = k[:, n] . q[:, m]
        # (sublane reductions give (1, N) rows; normalization deferred to the end)
        e = lax.dot_general(k, q, (((0,), (0,)), ((), ())),
                            preferred_element_type=jnp.float32)  # (N, N)
        e = e - jnp.max(e, axis=0, keepdims=True)
        pe = jnp.exp(e)
        inv = pl.reciprocal(jnp.sum(pe, axis=0, keepdims=True), approx=True)
        out = jnp.dot(v, pe, preferred_element_type=jnp.float32)  # (C, N) = v @ pe

        # merged relative-position terms:
        #   gamma*(Eh_bn + Ew_bn) = (mh*(g*s_r) + mw*(g*s_c)) @ q + g*(b_r+b_c)
        m_cat = jnp.dot(v, pcat, preferred_element_type=jnp.float32)   # (C, 2*KP)
        w_rel = m_cat[:, :kp] * gs_r + m_cat[:, kp:] * gs_c            # (C, KP)
        rel = jnp.dot(w_rel, q, preferred_element_type=jnp.float32)    # (C, N)

        # gamma*(attn + Eh_bn + Ew_bn) + x, one lane-dense (C, N) store
        o_ref[pl.ds(r0, c), :] = out * inv * g_full + rel + gbias + xt

    if bt == 1:
        process_image(0)
    else:
        # fori_loop (not a static unroll) bounds live ranges; slicing is along
        # the sublane/row axis, which supports dynamic offsets cheaply.
        def body(t, carry):
            r0 = t * c
            if c % 8 == 0:
                r0 = pl.multiple_of(r0, 8)
            process_image(r0)
            return carry
        lax.fori_loop(0, bt, body, 0)


# ----------------------------------------------------------------------------
# Wrapper: NCHW in / NCHW out (no layout transposes around the kernel)
# ----------------------------------------------------------------------------
def sam_forward(x_nchw, p, *, batch_block=None):
    B, C, H, W = x_nchw.shape
    assert H == W, "the reference .view(H*W, -1) on the reindexing tensor requires H == W"
    assert C >= 8, "in_dim // 8 must be >= 1"
    N = H * W
    C8 = C // 8
    KP = max(8, ((C8 + 7) // 8) * 8)        # q/k row-group padded to a sublane boundary
    eps = 1e-5

    if batch_block is None:
        batch_block = _pick_batch_block(B, N, C)
    Bt = batch_block
    assert B % Bt == 0
    assert (Bt * C) % 8 == 0 or Bt == B
    nb = B // Bt

    # NCHW-native view: channels on rows (sublanes), tokens on columns (lanes).
    x2d = x_nchw.reshape(B * C, N)                               # free reshape

    # fold 1x1 conv + eval-mode BN into a single (Cout, Cin) weight + bias
    def fold_conv_bn(w, b, g, beta, mean, var):
        s = g / jnp.sqrt(var + eps)
        return w * s[:, None], (b - mean) * s + beta             # (Cout, Cin), (Cout,)

    wq, bq = fold_conv_bn(p['q_w'], p['q_b'], p['q_bn_g'], p['q_bn_b'], p['q_bn_m'], p['q_bn_v'])
    wk, bk = fold_conv_bn(p['k_w'], p['k_b'], p['k_bn_g'], p['k_bn_b'], p['k_bn_m'], p['k_bn_v'])
    wv, bv = fold_conv_bn(p['v_w'], p['v_b'], p['v_bn_g'], p['v_bn_b'], p['v_bn_m'], p['v_bn_v'])

    def pad_rows(w, b, rows):
        wp = jnp.zeros((rows, C), jnp.float32).at[:w.shape[0], :].set(w)
        bp = jnp.zeros((rows,), jnp.float32).at[:b.shape[0]].set(b)
        return wp, bp

    wq_p, bq_p = pad_rows(wq, bq, KP)
    wk_p, bk_p = pad_rows(wk, bk, KP)
    # fused projection, v first and q/k 8-row aligned: [Wv | Wq | Wk], bias as last column
    w_pack = jnp.concatenate([wv, wq_p, wk_p], axis=0)           # (C+2*KP, C)
    b_pack = jnp.concatenate([bv, bq_p, bk_p], axis=0)[:, None]  # (C+2*KP, 1)
    w_aug = jnp.concatenate([w_pack, b_pack], axis=1)            # (C+2*KP, C+1)
    QKVP = w_aug.shape[0]

    # relative positional projections (batch-independent), merged & column-padded
    L = max(H, W)
    Ph = compute_reindexing_tensor(H, L).reshape(N, -1) @ p['rel_rows']     # (N, C8)
    Pw = compute_reindexing_tensor(W, L).reshape(N, -1) @ p['rel_columns']  # (N, C8)
    pad_cols = lambda m: jnp.zeros((N, KP), jnp.float32).at[:, :C8].set(m)
    p_cat = jnp.concatenate([pad_cols(Ph), pad_cols(Pw)], axis=1)           # (N, 2*KP)

    gamma = p['gamma'].astype(jnp.float32)[0]

    # eval-mode BN of the rel-pos branch folded to per-channel scale/bias with
    # gamma pre-applied; gamma itself rides along as a 4th column (no SMEM arg).
    def fold_bn(g, beta, mean, var):
        s = g / jnp.sqrt(var + eps)
        return s, beta - mean * s

    s_r, b_r = fold_bn(p['bnr_g'], p['bnr_b'], p['bnr_m'], p['bnr_v'])
    s_c, b_c = fold_bn(p['bnc_g'], p['bnc_b'], p['bnc_m'], p['bnc_v'])
    bn_pack = jnp.stack([gamma * s_r, gamma * s_c, gamma * (b_r + b_c),
                         jnp.full((C,), gamma, jnp.float32)], axis=1)       # (C, 4)

    out2d = pl.pallas_call(
        _sam_kernel,
        out_shape=jax.ShapeDtypeStruct((B * C, N), jnp.float32),
        grid=(nb,),
        in_specs=[
            pl.BlockSpec((Bt * C, N), lambda i: (i, 0)),      # x block: Bt images
            pl.BlockSpec((QKVP, C + 1), lambda i: (0, 0)),    # fused weights + bias (resident)
            pl.BlockSpec((N, 2 * KP), lambda i: (0, 0)),      # [Ph | Pw] (resident)
            pl.BlockSpec((C, 4), lambda i: (0, 0)),           # gamma-folded BN pack (resident)
        ],
        out_specs=pl.BlockSpec((Bt * C, N), lambda i: (i, 0)),
        compiler_params=pltpu.CompilerParams(
            dimension_semantics=("parallel",),
            # comfortably within v7x's 64 MiB physical VMEM; re-derive if N or
            # Bt grows (the (N, N) softmax intermediates scale quadratically).
            vmem_limit_bytes=32 * 1024 * 1024,
        ),
    )(x2d, w_aug, p_cat, bn_pack)

    return out2d.reshape(B, C, H, W)                             # free reshape


# ----------------------------------------------------------------------------
# Pure-JAX reference (follows the PyTorch code path, NCHW)
# ----------------------------------------------------------------------------
def sam_reference(x, p):
    B, C, H, W = x.shape
    N = H * W
    eps = 1e-5

    def conv_bn_relu(x, w, b, g, beta, mean, var):
        y = jnp.einsum('oc,bchw->bohw', w, x) + b[None, :, None, None]
        y = (y - mean[None, :, None, None]) / jnp.sqrt(var + eps)[None, :, None, None] \
            * g[None, :, None, None] + beta[None, :, None, None]
        return jnp.maximum(y, 0.0)

    def bn(y, g, beta, mean, var):
        return (y - mean[None, :, None, None]) / jnp.sqrt(var + eps)[None, :, None, None] \
            * g[None, :, None, None] + beta[None, :, None, None]

    q = conv_bn_relu(x, p['q_w'], p['q_b'], p['q_bn_g'], p['q_bn_b'], p['q_bn_m'], p['q_bn_v'])
    k = conv_bn_relu(x, p['k_w'], p['k_b'], p['k_bn_g'], p['k_bn_b'], p['k_bn_m'], p['k_bn_v'])
    v = conv_bn_relu(x, p['v_w'], p['v_b'], p['v_bn_g'], p['v_bn_b'], p['v_bn_m'], p['v_bn_v'])

    proj_query = q.reshape(B, -1, N).transpose(0, 2, 1)      # (B, N, C8)
    proj_key = k.reshape(B, -1, N)                           # (B, C8, N)
    energy = jnp.einsum('bnc,bcm->bnm', proj_query, proj_key)
    attention = jax.nn.softmax(energy, axis=-1)
    proj_value = v.reshape(B, -1, N)                         # (B, C, N)
    out = jnp.einsum('bcn,bmn->bcm', proj_value, attention)
    attention_mask = out.reshape(B, C, H, W)

    L = max(H, W)
    proj_queryT = proj_query.transpose(0, 2, 1)              # (B, C8, N)

    Ih = compute_reindexing_tensor(H, L).reshape(H * W, -1)
    Ph = Ih @ p['rel_rows']
    Eh = jnp.einsum('bcn,bnm->bcm', proj_value,
                    jnp.einsum('nd,bdm->bnm', Ph, proj_queryT)).reshape(B, C, H, W)
    Eh = bn(Eh, p['bnr_g'], p['bnr_b'], p['bnr_m'], p['bnr_v'])

    Iw = compute_reindexing_tensor(W, L).reshape(H * W, -1)
    Pw = Iw @ p['rel_columns']
    Ew = jnp.einsum('bcn,bnm->bcm', proj_value,
                    jnp.einsum('nd,bdm->bnm', Pw, proj_queryT)).reshape(B, C, H, W)
    Ew = bn(Ew, p['bnc_g'], p['bnc_b'], p['bnc_m'], p['bnc_v'])

    attention_mask = attention_mask + Eh + Ew
    return p['gamma'][0] * attention_mask + x


# ----------------------------------------------------------------------------
# main
# ----------------------------------------------------------------------------
if __name__ == "__main__":
    B, C, H, W = 2, 32, 16, 16          # N = 256 tokens -> lane-dense blocks, grid=(2,)
    rel_pos_length = max(H, W)          # must equal max(H, W) for the rel-pos matmul
    C8 = C // 8
    num_rel = 2 * rel_pos_length - 1

    key = jax.random.PRNGKey(0)
    ks = jax.random.split(key, 24)

    def bn_params(k0, k1, n):
        return (1.0 + 0.1 * jax.random.normal(k0, (n,), jnp.float32),   # weight
                0.1 * jax.random.normal(k1, (n,), jnp.float32),         # bias
                jnp.zeros((n,), jnp.float32),                           # running_mean
                jnp.ones((n,), jnp.float32))                            # running_var

    q_bn = bn_params(ks[2], ks[3], C8)
    k_bn = bn_params(ks[6], ks[7], C8)
    v_bn = bn_params(ks[10], ks[11], C)
    r_bn = bn_params(ks[14], ks[15], C)
    c_bn = bn_params(ks[16], ks[17], C)

    params = {
        'q_w': 0.1 * jax.random.normal(ks[0], (C8, C), jnp.float32),
        'q_b': 0.1 * jax.random.normal(ks[1], (C8,), jnp.float32),
        'q_bn_g': q_bn[0], 'q_bn_b': q_bn[1], 'q_bn_m': q_bn[2], 'q_bn_v': q_bn[3],
        'k_w': 0.1 * jax.random.normal(ks[4], (C8, C), jnp.float32),
        'k_b': 0.1 * jax.random.normal(ks[5], (C8,), jnp.float32),
        'k_bn_g': k_bn[0], 'k_bn_b': k_bn[1], 'k_bn_m': k_bn[2], 'k_bn_v': k_bn[3],
        'v_w': 0.1 * jax.random.normal(ks[8], (C, C), jnp.float32),
        'v_b': 0.1 * jax.random.normal(ks[9], (C,), jnp.float32),
        'v_bn_g': v_bn[0], 'v_bn_b': v_bn[1], 'v_bn_m': v_bn[2], 'v_bn_v': v_bn[3],
        'bnr_g': r_bn[0], 'bnr_b': r_bn[1], 'bnr_m': r_bn[2], 'bnr_v': r_bn[3],
        'bnc_g': c_bn[0], 'bnc_b': c_bn[1], 'bnc_m': c_bn[2], 'bnc_v': c_bn[3],
        'rel_rows': jax.random.normal(ks[18], (num_rel, C8), jnp.float32),
        'rel_columns': jax.random.normal(ks[19], (num_rel, C8), jnp.float32),
        # nn.Parameter(torch.zeros(1)) in the module; set nonzero so the
        # attention branch actually contributes in this synthetic test.
        'gamma': jnp.full((1,), 0.5, jnp.float32),
    }

    x = jax.random.normal(ks[20], (B, C, H, W), jnp.float32)

    out = sam_forward(x, params)
    out = jax.block_until_ready(out)

    ref = sam_reference(x, params)
    assert out.shape == (B, C, H, W)
    # tolerance slightly relaxed vs exact f32: approx EUP reciprocal in the
    # deferred softmax normalization + fused/folded-matmul reassociation.
    assert jnp.allclose(out, ref, rtol=2e-3, atol=2e-3), "Pallas kernel mismatch vs reference"

    print("KERNEL_OK")
</pallas_src>

<mosaic_0001>
module attributes {stable_mosaic.version = 11 : i64} {
  func.func @_sam_kernel(%arg0: i32, %arg1: memref<32x256xf32, #tpu.memory_space<vmem>>, %arg2: memref<48x33xf32, #tpu.memory_space<vmem>>, %arg3: memref<256x16xf32, #tpu.memory_space<vmem>>, %arg4: memref<32x4xf32, #tpu.memory_space<vmem>>, %arg5: memref<32x256xf32, #tpu.memory_space<vmem>>) attributes {dimension_semantics = [#tpu.dimension_semantics<parallel>], iteration_bounds = array<i64: 2>, scalar_prefetch = 0 : i64, scratch_operands = 0 : i64, tpu.core_type = #tpu.core_type<tc>, window_params = [{transform_indices = @transform_0, window_bounds = array<i64: 32, 256>}, {pipeline_mode = #tpu.pipeline_mode<synchronous>, transform_indices = @transform_1, window_bounds = array<i64: 48, 33>}, {pipeline_mode = #tpu.pipeline_mode<synchronous>, transform_indices = @transform_2, window_bounds = array<i64: 256, 16>}, {pipeline_mode = #tpu.pipeline_mode<synchronous>, transform_indices = @transform_3, window_bounds = array<i64: 32, 4>}, {transform_indices = @transform_4, window_bounds = array<i64: 32, 256>}]} {
    %c0 = arith.constant 0 : index
    %c0_0 = arith.constant 0 : index
    %0 = vector.load %arg2[%c0, %c0_0] : memref<48x33xf32, #tpu.memory_space<vmem>>, vector<48x33xf32>
    %1 = vector.extract_strided_slice %0 {offsets = [0, 0], sizes = [48, 32], strides = [1, 1]} : vector<48x33xf32> to vector<48x32xf32>
    %2 = vector.extract_strided_slice %0 {offsets = [0, 32], sizes = [48, 1], strides = [1, 1]} : vector<48x33xf32> to vector<48x1xf32>
    %3 = vector.shape_cast %2 : vector<48x1xf32> to vector<48x1xf32>
    %4 = vector.broadcast %3 : vector<48x1xf32> to vector<48x256xf32>
    %c0_1 = arith.constant 0 : index
    %c0_2 = arith.constant 0 : index
    %5 = vector.load %arg4[%c0_1, %c0_2] : memref<32x4xf32, #tpu.memory_space<vmem>>, vector<32x4xf32>
    %6 = vector.extract_strided_slice %5 {offsets = [0, 0], sizes = [32, 1], strides = [1, 1]} : vector<32x4xf32> to vector<32x1xf32>
    %7 = vector.extract_strided_slice %5 {offsets = [0, 1], sizes = [32, 1], strides = [1, 1]} : vector<32x4xf32> to vector<32x1xf32>
    %8 = vector.extract_strided_slice %5 {offsets = [0, 2], sizes = [32, 1], strides = [1, 1]} : vector<32x4xf32> to vector<32x1xf32>
    %9 = vector.shape_cast %8 : vector<32x1xf32> to vector<32x1xf32>
    %10 = vector.broadcast %9 : vector<32x1xf32> to vector<32x256xf32>
    %11 = vector.extract_strided_slice %5 {offsets = [0, 3], sizes = [32, 1], strides = [1, 1]} : vector<32x4xf32> to vector<32x1xf32>
    %12 = vector.shape_cast %11 : vector<32x1xf32> to vector<32x1xf32>
    %13 = vector.broadcast %12 : vector<32x1xf32> to vector<32x256xf32>
    %c0_3 = arith.constant 0 : index
    %c0_4 = arith.constant 0 : index
    %14 = vector.load %arg3[%c0_3, %c0_4] : memref<256x16xf32, #tpu.memory_space<vmem>>, vector<256x16xf32>
    %c0_5 = arith.constant 0 : index
    %c0_6 = arith.constant 0 : index
    %15 = vector.load %arg1[%c0_5, %c0_6] : memref<32x256xf32, #tpu.memory_space<vmem>>, vector<32x256xf32>
    %cst = arith.constant dense<0.000000e+00> : vector<48x256xf32>
    %16 = tpu.matmul %1, %15, %cst {dimension_numbers = #tpu.dot_dimension_numbers<[1], [0], [0], [1], [0, 0, 1, 1], [], []>} : vector<48x32xf32>, vector<32x256xf32>, vector<48x256xf32> -> vector<48x256xf32>
    %17 = arith.addf %16, %4 : vector<48x256xf32>
    %cst_7 = arith.constant 0.000000e+00 : f32
    %18 = vector.broadcast %cst_7 : f32 to vector<48x256xf32>
    %19 = arith.maximumf %17, %18 : vector<48x256xf32>
    %20 = vector.extract_strided_slice %19 {offsets = [0, 0], sizes = [32, 256], strides = [1, 1]} : vector<48x256xf32> to vector<32x256xf32>
    %21 = vector.extract_strided_slice %19 {offsets = [32, 0], sizes = [8, 256], strides = [1, 1]} : vector<48x256xf32> to vector<8x256xf32>
    %22 = vector.extract_strided_slice %19 {offsets = [40, 0], sizes = [8, 256], strides = [1, 1]} : vector<48x256xf32> to vector<8x256xf32>
    %cst_8 = arith.constant dense<0.000000e+00> : vector<256x256xf32>
    %23 = tpu.matmul %22, %21, %cst_8 {dimension_numbers = #tpu.dot_dimension_numbers<[0], [0], [1], [1], [0, 1, 1, 1], [], []>} : vector<8x256xf32>, vector<8x256xf32>, vector<256x256xf32> -> vector<256x256xf32>
    %cst_9 = arith.constant dense<0xFF800000> : vector<256xf32>
    %24 = vector.multi_reduction <maximumf>, %23, %cst_9 [0] : vector<256x256xf32> to vector<256xf32>
    %25 = vector.shape_cast %24 : vector<256xf32> to vector<1x256xf32>
    %26 = vector.broadcast %25 : vector<1x256xf32> to vector<256x256xf32>
    %27 = arith.subf %23, %26 : vector<256x256xf32>
    %28 = math.exp %27 : vector<256x256xf32>
    %cst_10 = arith.constant dense<0.000000e+00> : vector<256xf32>
    %29 = vector.multi_reduction <add>, %28, %cst_10 [0] : vector<256x256xf32> to vector<256xf32>
    %30 = vector.shape_cast %29 : vector<256xf32> to vector<1x256xf32>
    %31 = tpu.reciprocal %30 {approx = true} : vector<1x256xf32> -> vector<1x256xf32>
    %cst_11 = arith.constant dense<0.000000e+00> : vector<32x256xf32>
    %32 = tpu.matmul %20, %28, %cst_11 {dimension_numbers = #tpu.dot_dimension_numbers<[1], [0], [0], [1], [0, 0, 1, 1], [], []>} : vector<32x256xf32>, vector<256x256xf32>, vector<32x256xf32> -> vector<32x256xf32>
    %cst_12 = arith.constant dense<0.000000e+00> : vector<32x16xf32>
    %33 = tpu.matmul %20, %14, %cst_12 {dimension_numbers = #tpu.dot_dimension_numbers<[1], [0], [0], [1], [0, 0, 1, 1], [], []>} : vector<32x256xf32>, vector<256x16xf32>, vector<32x16xf32> -> vector<32x16xf32>
    %34 = vector.extract_strided_slice %33 {offsets = [0, 0], sizes = [32, 8], strides = [1, 1]} : vector<32x16xf32> to vector<32x8xf32>
    %35 = vector.broadcast %6 : vector<32x1xf32> to vector<32x8xf32>
    %36 = arith.mulf %34, %35 : vector<32x8xf32>
    %37 = vector.extract_strided_slice %33 {offsets = [0, 8], sizes = [32, 8], strides = [1, 1]} : vector<32x16xf32> to vector<32x8xf32>
    %38 = vector.broadcast %7 : vector<32x1xf32> to vector<32x8xf32>
    %39 = arith.mulf %37, %38 : vector<32x8xf32>
    %40 = arith.addf %36, %39 : vector<32x8xf32>
    %cst_13 = arith.constant dense<0.000000e+00> : vector<32x256xf32>
    %41 = tpu.matmul %40, %21, %cst_13 {dimension_numbers = #tpu.dot_dimension_numbers<[1], [0], [0], [1], [0, 0, 1, 1], [], []>} : vector<32x8xf32>, vector<8x256xf32>, vector<32x256xf32> -> vector<32x256xf32>
    %42 = vector.broadcast %31 : vector<1x256xf32> to vector<32x256xf32>
    %43 = arith.mulf %32, %42 : vector<32x256xf32>
    %44 = arith.mulf %43, %13 : vector<32x256xf32>
    %45 = arith.addf %44, %41 : vector<32x256xf32>
    %46 = arith.addf %45, %10 : vector<32x256xf32>
    %47 = arith.addf %46, %15 : vector<32x256xf32>
    %c0_14 = arith.constant 0 : index
    %c0_15 = arith.constant 0 : index
    %48 = vector.load %arg5[%c0_14, %c0_15] : memref<32x256xf32, #tpu.memory_space<vmem>>, vector<32x256xf32>
    tpu.vector_store %arg5[%c0_14, %c0_15], %47 {strides = array<i32>} : memref<32x256xf32, #tpu.memory_space<vmem>>, vector<32x256xf32>,
    return
  }
  func.func @transform_0(%arg0: i32) -> (i32, i32) {
    %c0_i32 = arith.constant 0 : i32
    %c0_i32_0 = arith.constant 0 : i32
    return %arg0, %c0_i32 : i32, i32
  }
  func.func @transform_1(%arg0: i32) -> (i32, i32) {
    %c0_i32 = arith.constant 0 : i32
    %c0_i32_0 = arith.constant 0 : i32
    %c0_i32_1 = arith.constant 0 : i32
    return %c0_i32, %c0_i32_0 : i32, i32
  }
  func.func @transform_2(%arg0: i32) -> (i32, i32) {
    %c0_i32 = arith.constant 0 : i32
    %c0_i32_0 = arith.constant 0 : i32
    %c0_i32_1 = arith.constant 0 : i32
    return %c0_i32, %c0_i32_0 : i32, i32
  }
  func.func @transform_3(%arg0: i32) -> (i32, i32) {
    %c0_i32 = arith.constant 0 : i32
    %c0_i32_0 = arith.constant 0 : i32
    %c0_i32_1 = arith.constant 0 : i32
    return %c0_i32, %c0_i32_0 : i32, i32
  }
  func.func @transform_4(%arg0: i32) -> (i32, i32) {
    %c0_i32 = arith.constant 0 : i32
    %c0_i32_0 = arith.constant 0 : i32
    return %arg0, %c0_i32 : i32, i32
  }
}

</mosaic_0001>

<llo_original>
// kernel: tpu_custom_call.1
$region0: #{tpu_custom_call.1}
  #allocation0 [shape = 'u32[]', space=smem, size = 0x4, offset = 0x4, fixed_abs, tag = 'smem constant byte address 0x4 - core index']
  #allocation1 [shape = 'u32[144,128]{1,0:T(1,128)}', space=vmem, size = 0x12000, scoped, tag = 'internal scratch']
  %s0 = inlined_call_operand.vmem [shape: f32[64,256], index: 0, kind: input, shape index: {}]
  %s1 = inlined_call_operand.vmem [shape: f32[48,33], index: 1, kind: input, shape index: {}]
  %s2 = inlined_call_operand.vmem [shape: f32[256,16], index: 2, kind: input, shape index: {}]
  %s3 = inlined_call_operand.vmem [shape: f32[32,4], index: 3, kind: input, shape index: {}]
  %s4 = inlined_call_operand.hbm [shape: f32[64,256], index: 4, kind: output, shape index: {}]
  %s5 = sld [smem:[#allocation0]]
  $region49: #{tpu_custom_call.1} parent=0
    _
  %s7 = ssub.s32 1, %s5
  %s8 = scalar_select 0, %s7, %s5
  $region1: #{tpu_custom_call.1} parent=0
    #allocation2 [shape = 'u8[65536]{0}', space=vmem, size = 0x10000, scoped, tag = 'output window, operand 0']
    #allocation3 [shape = 's32[2]{0}', space=sflag, size = 0x8, scoped, tag = 'scoped memory for tpu_custom_call.1']
    %9 = vsyncpa [#allocation3], 0
    %s10 = scalar_lea.sflag [#allocation3], 1
    %11 = vsyncpa %s10, 0
    loop: start=0, step=1, limit=4
    $region2: #{tpu_custom_call.1} parent=1 // loop_pre_header
      _
    $region3: #{tpu_custom_call.1} parent=1 // loop_header
      %s13 = sphi 0, %s17
      %p14 = scmp.ge.s32.totalorder %s13, 4
      %s23 = sphi 0, %s25
      %s26 = sphi 0, %s23
      %s27 = sphi 0, %s26
      %s43 = sphi 0, %s27
      %s47 = sphi 0, %s47
      %s49 = sphi 0, %s47
      %s50 = sphi 0, %s49
      %s64 = sphi 0, %s50
      %s68 = sphi 0, %s68
      %s70 = sphi 0, %s68
      %s71 = sphi 0, %s70
      %s85 = sphi 0, %s71
      %s89 = sphi 0, %s89
      %s91 = sphi 0, %s89
      %s92 = sphi 0, %s91
      %s106 = sphi 0, %s92
      %s112 = sphi 0, %s114
      %s115 = sphi 0, %s112
      %s116 = sphi 0, %s115
      %s132 = sphi 0, %s116
    $region4: #{tpu_custom_call.1} parent=1 // loop_header_branch
      %16 = sbr.rel (%p14) target = $region8
    $region5: #{tpu_custom_call.1} parent=1 // loop_body
      %s18 = ssub.s32 %s13, 1
      %s19 = ssub.s32 %s13, 2
      %s20 = sadd.s32 %s13, 1
      %s21 = ssub.s32 %s13, %s20
      %p22 = scmp.eq.s32.totalorder %s21, 0
      %s24 = sadd.s32 %s23, 1
      %s25 = scalar_select %p22, %s23, %s24
      %p28 = pneg %p22
      %p29 = scmp.eq.s32.totalorder %s13, 1
      %p30 = por %p28, %p29
      %p31 = scmp.ne.s32.totalorder %s23, %s26
      %p32 = scmp.eq.s32.totalorder %s13, 0
      %p33 = por %p31, %p32
      %p34 = scmp.ne.s32.totalorder %s23, %s26
      %p35 = scmp.eq.s32.totalorder %s18, 1
      %p36 = por %p34, %p35
      %p37 = scmp.ne.s32.totalorder %s26, %s27
      %p38 = scmp.eq.s32.totalorder %s18, 0
      %p39 = por %p37, %p38
      %p40 = scmp.ne.s32.totalorder %s26, %s27
      %p41 = scmp.eq.s32.totalorder %s19, 1
      %p42 = por %p40, %p41
      %p44 = scmp.ne.s32.totalorder %s27, %s43
      %p45 = scmp.eq.s32.totalorder %s19, 0
      %p46 = por %p44, %p45
      %s48 = sadd.s32 %s47, 1
      %p51 = scmp.eq.s32.totalorder %s13, 1
      %p52 = scmp.ne.s32.totalorder %s47, %s49
      %p53 = scmp.eq.s32.totalorder %s13, 0
      %p54 = por %p52, %p53
      %p55 = scmp.ne.s32.totalorder %s47, %s49
      %p56 = scmp.eq.s32.totalorder %s18, 1
      %p57 = por %p55, %p56
      %p58 = scmp.ne.s32.totalorder %s49, %s50
      %p59 = scmp.eq.s32.totalorder %s18, 0
      %p60 = por %p58, %p59
      %p61 = scmp.ne.s32.totalorder %s49, %s50
      %p62 = scmp.eq.s32.totalorder %s19, 1
      %p63 = por %p61, %p62
      %p65 = scmp.ne.s32.totalorder %s50, %s64
      %p66 = scmp.eq.s32.totalorder %s19, 0
      %p67 = por %p65, %p66
      %s69 = sadd.s32 %s68, 1
      %p72 = scmp.eq.s32.totalorder %s13, 1
      %p73 = scmp.ne.s32.totalorder %s68, %s70
      %p74 = scmp.eq.s32.totalorder %s13, 0
      %p75 = por %p73, %p74
      %p76 = scmp.ne.s32.totalorder %s68, %s70
      %p77 = scmp.eq.s32.totalorder %s18, 1
      %p78 = por %p76, %p77
      %p79 = scmp.ne.s32.totalorder %s70, %s71
      %p80 = scmp.eq.s32.totalorder %s18, 0
      %p81 = por %p79, %p80
      %p82 = scmp.ne.s32.totalorder %s70, %s71
      %p83 = scmp.eq.s32.totalorder %s19, 1
      %p84 = por %p82, %p83
      %p86 = scmp.ne.s32.totalorder %s71, %s85
      %p87 = scmp.eq.s32.totalorder %s19, 0
      %p88 = por %p86, %p87
      %s90 = sadd.s32 %s89, 1
      %p93 = scmp.eq.s32.totalorder %s13, 1
      %p94 = scmp.ne.s32.totalorder %s89, %s91
      %p95 = scmp.eq.s32.totalorder %s13, 0
      %p96 = por %p94, %p95
      %p97 = scmp.ne.s32.totalorder %s89, %s91
      %p98 = scmp.eq.s32.totalorder %s18, 1
      %p99 = por %p97, %p98
      %p100 = scmp.ne.s32.totalorder %s91, %s92
      %p101 = scmp.eq.s32.totalorder %s18, 0
      %p102 = por %p100, %p101
      %p103 = scmp.ne.s32.totalorder %s91, %s92
      %p104 = scmp.eq.s32.totalorder %s19, 1
      %p105 = por %p103, %p104
      %p107 = scmp.ne.s32.totalorder %s92, %s106
      %p108 = scmp.eq.s32.totalorder %s19, 0
      %p109 = por %p107, %p108
      %s110 = ssub.s32 %s13, %s20
      %p111 = scmp.eq.s32.totalorder %s110, 0
      %s113 = sadd.s32 %s112, 1
      %s114 = scalar_select %p111, %s112, %s113
      %p117 = pneg %p111
      %p118 = scmp.eq.s32.totalorder %s13, 1
      %p119 = por %p117, %p118
      %p120 = scmp.ne.s32.totalorder %s112, %s115
      %p121 = scmp.eq.s32.totalorder %s13, 0
      %p122 = por %p120, %p121
      %p123 = scmp.ne.s32.totalorder %s112, %s115
      %p124 = scmp.eq.s32.totalorder %s18, 1
      %p125 = por %p123, %p124
      %p126 = scmp.ne.s32.totalorder %s115, %s116
      %p127 = scmp.eq.s32.totalorder %s18, 0
      %p128 = por %p126, %p127
      %p129 = scmp.ne.s32.totalorder %s115, %s116
      %p130 = scmp.eq.s32.totalorder %s19, 1
      %p131 = por %p129, %p130
      %p133 = scmp.ne.s32.totalorder %s116, %s132
      %p134 = scmp.eq.s32.totalorder %s19, 0
      %p135 = por %p133, %p134
      %p136 = scmp.le.s32.totalorder 1, %s13
      %p137 = scmp.lt.s32.totalorder %s13, 3
      %p138 = pnand %p136, %p137
      %p139 = pneg %p138
      // Predicated region
      $region9: #{tpu_custom_call.1} parent=5 // pred_check
        _
      $region10: #{tpu_custom_call.1} parent=5 // pred_check_branch
        %141 = sbr.rel (%p138) target = $region12
      $region11: #{tpu_custom_call.1} parent=5 // pred_region
        %s142 = ssub.s32 %s13, 1
        // Predicated region
        $region13: #{tpu_custom_call.1} parent=11 // pred_check
          %p143 = pneg %p60
        $region14: #{tpu_custom_call.1} parent=11 // pred_check_branch
          %145 = sbr.rel (%p143) target = $region16
        $region15: #{tpu_custom_call.1} parent=11 // pred_region
          _
        $region16: #{tpu_custom_call.1} parent=11 // pred_fallthru
          _
        // Predicated region
        $region17: #{tpu_custom_call.1} parent=11 // pred_check
          %p146 = pneg %p81
        $region18: #{tpu_custom_call.1} parent=11 // pred_check_branch
          %148 = sbr.rel (%p146) target = $region20
        $region19: #{tpu_custom_call.1} parent=11 // pred_region
          _
        $region20: #{tpu_custom_call.1} parent=11 // pred_fallthru
          _
        // Predicated region
        $region21: #{tpu_custom_call.1} parent=11 // pred_check
          %p149 = pneg %p102
        $region22: #{tpu_custom_call.1} parent=11 // pred_check_branch
          %151 = sbr.rel (%p149) target = $region24
        $region23: #{tpu_custom_call.1} parent=11 // pred_region
          _
        $region24: #{tpu_custom_call.1} parent=11 // pred_fallthru
          _
      $region12: #{tpu_custom_call.1} parent=5 // pred_fallthru
        _
      %p152 = scmp.lt.s32.totalorder %s13, 2
      // Predicated region
      $region25: #{tpu_custom_call.1} parent=5 // pred_check
        %p153 = pneg %p152
      $region26: #{tpu_custom_call.1} parent=5 // pred_check_branch
        %155 = sbr.rel (%p153) target = $region28
      $region27: #{tpu_custom_call.1} parent=5 // pred_region
        // Predicated region
        $region29: #{tpu_custom_call.1} parent=27 // pred_check
          %p156 = pneg %p33
        $region30: #{tpu_custom_call.1} parent=27 // pred_check_branch
          %158 = sbr.rel (%p156) target = $region32
        $region31: #{tpu_custom_call.1} parent=27 // pred_region
          %s159 = smul.u32 4, %s13
          %p160 = scmp.lt.s32.totalorder %s159, 7
          %s161 = scalar_select %p160, %s159, 7
          %s162 = smul.addr %s161, 2
          %s163 = smul.addr %s162, 8
          %s164 = scalar_lea.vmem %s0, %s163
          %s165 = smul.u32 4, %s13
        $region32: #{tpu_custom_call.1} parent=27 // pred_fallthru
          _
      $region28: #{tpu_custom_call.1} parent=5 // pred_fallthru
        _
      %p166 = scmp.le.s32.totalorder 1, %s13
      %p167 = scmp.lt.s32.totalorder %s13, 3
      %p168 = pnand %p166, %p167
      %p169 = pneg %p168
      // Predicated region
      $region33: #{tpu_custom_call.1} parent=5 // pred_check
        _
      $region34: #{tpu_custom_call.1} parent=5 // pred_check_branch
        %171 = sbr.rel (%p168) target = $region36
      $region35: #{tpu_custom_call.1} parent=5 // pred_region
        %s172 = ssub.s32 %s13, 1
        %s173 = smul.u32 4, %s18
        %p174 = scmp.lt.s32.totalorder %s173, 7
        %s175 = scalar_select %p174, %s173, 7
        %s176 = smul.addr %s175, 2
        %s177 = smul.addr %s176, 8
        %s178 = scalar_lea.vmem %s0, %s177
        %p179 = pneg %p39
        %p180 = pneg %p36
        %p181 = pneg %p60
        %p182 = pneg %p57
        %p183 = pneg %p81
        %p184 = pneg %p78
        %p185 = pneg %p102
        %p186 = pneg %p99
        %p187 = pneg %p128
        %p188 = pneg %p125
        %s189 = sand.u32 %s115, 1
        %s190 = scalar_lea.sflag [#allocation3], %s189
        %s191 = sand.u32 %s115, 1
        %s192 = smul.addr %s191, 64
        %s193 = scalar_lea.vmem [#allocation2], %s192
        %s194 = smul.u32 4, %s18
        %p195 = scmp.lt.s32.totalorder %s194, 7
        %s196 = scalar_select %p195, %s194, 7
        %s197 = smul.addr %s196, 2
        %s198 = smul.addr %s197, 8
        %s199 = scalar_lea.vmem %s0, %s198
        %s200 = smul.u32 4, %s18
        %s201 = smul.u32 4, %s18
        %v202 = vld [vmem:[%s1] sm:$0xff]
        %v203 = vld [vmem:[%s1 + $0x8] sm:$0xff]
        %v204 = vld [vmem:[%s1 + $0x10] sm:$0xff]
        %v205 = vld [vmem:[%s1 + $0x18] sm:$0xff]
        %v206 = vld [vmem:[%s1 + $0x20] sm:$0xff]
        %v207 = vld [vmem:[%s1 + $0x28] sm:$0xff]
        %209 = vset.pattern.permute.xlu0 32
        %210 = vperm.xlu0 %209, %v202
        %v211 = vpop.permute.xlu0 %210
        %214 = vset.pattern.permute.xlu0 32
        %215 = vperm.xlu0 %214, %v203
        %v216 = vpop.permute.xlu0 %215
        %219 = vset.pattern.permute.xlu0 32
        %220 = vperm.xlu0 %219, %v204
        %v221 = vpop.permute.xlu0 %220
        %224 = vset.pattern.permute.xlu0 32
        %225 = vperm.xlu0 %224, %v205
        %v226 = vpop.permute.xlu0 %225
        %229 = vset.pattern.permute.xlu0 32
        %230 = vperm.xlu0 %229, %v206
        %v231 = vpop.permute.xlu0 %230
        %234 = vset.pattern.permute.xlu0 32
        %235 = vperm.xlu0 %234, %v207
        %v236 = vpop.permute.xlu0 %235
        %v238 = vld [vmem:[%s3] sm:$0xff]
        %v239 = vld [vmem:[%s3 + $0x8] sm:$0xff]
        %v240 = vld [vmem:[%s3 + $0x10] sm:$0xff]
        %v241 = vld [vmem:[%s3 + $0x18] sm:$0xff]
        %243 = vset.pattern.permute.xlu0 2
        %244 = vperm.xlu0 %243, %v238
        %v245 = vpop.permute.xlu0 %244
        %248 = vset.pattern.permute.xlu0 2
        %249 = vperm.xlu0 %248, %v239
        %v250 = vpop.permute.xlu0 %249
        %253 = vset.pattern.permute.xlu0 2
        %254 = vperm.xlu0 %253, %v240
        %v255 = vpop.permute.xlu0 %254
        %258 = vset.pattern.permute.xlu0 2
        %259 = vperm.xlu0 %258, %v241
        %v260 = vpop.permute.xlu0 %259
        %262 = vset.pattern.permute.xlu0 3
        %263 = vperm.xlu0 %262, %v238
        %v264 = vpop.permute.xlu0 %263
        %266 = vset.pattern.permute.xlu0 3
        %267 = vperm.xlu0 %266, %v239
        %v268 = vpop.permute.xlu0 %267
        %270 = vset.pattern.permute.xlu0 3
        %271 = vperm.xlu0 %270, %v240
        %v272 = vpop.permute.xlu0 %271
        %274 = vset.pattern.permute.xlu0 3
        %275 = vperm.xlu0 %274, %v241
        %v276 = vpop.permute.xlu0 %275
        %v278 = vld [vmem:[%s2] sm:$0xff]
        %v279 = vld [vmem:[%s2 + $0x8] sm:$0xff]
        %v280 = vld [vmem:[%s2 + $0x10] sm:$0xff]
        %v281 = vld [vmem:[%s2 + $0x18] sm:$0xff]
        %v282 = vld [vmem:[%s2 + $0x20] sm:$0xff]
        %v283 = vld [vmem:[%s2 + $0x28] sm:$0xff]
        %v284 = vld [vmem:[%s2 + $0x30] sm:$0xff]
        %v285 = vld [vmem:[%s2 + $0x38] sm:$0xff]
        %v286 = vld [vmem:[%s2 + $0x40] sm:$0xff]
        %v287 = vld [vmem:[%s2 + $0x48] sm:$0xff]
        %v288 = vld [vmem:[%s2 + $0x50] sm:$0xff]
        %v289 = vld [vmem:[%s2 + $0x58] sm:$0xff]
        %v290 = vld [vmem:[%s2 + $0x60] sm:$0xff]
        %v291 = vld [vmem:[%s2 + $0x68] sm:$0xff]
        %v292 = vld [vmem:[%s2 + $0x70] sm:$0xff]
        %v293 = vld [vmem:[%s2 + $0x78] sm:$0xff]
        %v294 = vld [vmem:[%s2 + $0x80] sm:$0xff]
        %v295 = vld [vmem:[%s2 + $0x88] sm:$0xff]
        %v296 = vld [vmem:[%s2 + $0x90] sm:$0xff]
        %v297 = vld [vmem:[%s2 + $0x98] sm:$0xff]
        %v298 = vld [vmem:[%s2 + $0xa0] sm:$0xff]
        %v299 = vld [vmem:[%s2 + $0xa8] sm:$0xff]
        %v300 = vld [vmem:[%s2 + $0xb0] sm:$0xff]
        %v301 = vld [vmem:[%s2 + $0xb8] sm:$0xff]
        %v302 = vld [vmem:[%s2 + $0xc0] sm:$0xff]
        %v303 = vld [vmem:[%s2 + $0xc8] sm:$0xff]
        %v304 = vld [vmem:[%s2 + $0xd0] sm:$0xff]
        %v305 = vld [vmem:[%s2 + $0xd8] sm:$0xff]
        %v306 = vld [vmem:[%s2 + $0xe0] sm:$0xff]
        %v307 = vld [vmem:[%s2 + $0xe8] sm:$0xff]
        %v308 = vld [vmem:[%s2 + $0xf0] sm:$0xff]
        %v309 = vld [vmem:[%s2 + $0xf8] sm:$0xff]
        %v310 = vld [vmem:[%s199] sm:$0xff]
        %v311 = vld [vmem:[%s199 + $0x8] sm:$0xff]
        %v312 = vld [vmem:[%s199 + $0x10] sm:$0xff]
        %v313 = vld [vmem:[%s199 + $0x18] sm:$0xff]
        %v314 = vld [vmem:[%s199 + $0x20] sm:$0xff]
        %v315 = vld [vmem:[%s199 + $0x28] sm:$0xff]
        %v316 = vld [vmem:[%s199 + $0x30] sm:$0xff]
        %v317 = vld [vmem:[%s199 + $0x38] sm:$0xff]
        %vm318 = vcmask 261120
        %v319 = vsel %vm318, %v202, 0
        %v321 = vsel %vm318, %v203, 0
        %v323 = vsel %vm318, %v204, 0
        %v325 = vsel %vm318, %v205, 0
        %v327 = vsel %vm318, %v206, 0
        %v329 = vsel %vm318, %v207, 0
        %331 = vmatprep.subr.mxu0 %v311
        %332 = vmatpush1.msra.mxu0 %v310
        %333 = vmatprep.subr.mxu0 %v313
        %334 = vmatpush1.msra.mxu0 %v312
        %335 = vmatprep.subr.mxu0 %v315
        %336 = vmatpush1.msra.mxu0 %v314
        %337 = vmatprep.subr.mxu0 %v317
        %338 = vmatpush1.msra.mxu0 %v316
        %339 = vmatprep.subr.mxu0 0.0
        %340 = vmatpush1.msra.mxu0 0.0
        %341 = vmatprep.subr.mxu0 0.0
        %342 = vmatpush1.msra.mxu0 0.0
        %343 = vmatprep.subr.mxu0 0.0
        %344 = vmatpush1.msra.mxu0 0.0
        %345 = vmatprep.subr.mxu0 0.0
        %346 = vmatpush1.msra.mxu0 0.0
        %347 = vmatprep.subr.mxu0 0.0
        %348 = vmatpush1.msra.mxu0 0.0
        %349 = vmatprep.subr.mxu0 0.0
        %350 = vmatpush1.msra.mxu0 0.0
        %351 = vmatprep.subr.mxu0 0.0
        %352 = vmatpush1.msra.mxu0 0.0
        %353 = vmatprep.subr.mxu0 0.0
        %354 = vmatpush1.msra.mxu0 0.0
        %355 = vmatprep.subr.mxu0 0.0
        %356 = vmatpush1.msra.mxu0 0.0
        %357 = vmatprep.subr.mxu0 0.0
        %358 = vmatpush1.msra.mxu0 0.0
        %359 = vmatprep.subr.mxu0 0.0
        %360 = vmatpush1.msra.mxu0 0.0
        %361 = vmatprep.subr.mxu0 0.0
        %362 = vmatpush1.msra.mxu0 0.0
        %363 = vmatprep.subr.mxu0 0.0
        %364 = vmatpush1.msra.mxu0 0.0
        %365 = vmatprep.subr.mxu0 0.0
        %366 = vmatpush1.msra.mxu0 0.0
        %367 = vmatprep.subr.mxu0 0.0
        %368 = vmatpush1.msra.mxu0 0.0
        %369 = vmatprep.subr.mxu0 0.0
        %370 = vmatpush1.msra.mxu0 0.0
        %371 = vmatprep.subr.mxu0 0.0
        %372 = vmatpush1.msra.mxu0 0.0
        %373 = vmatprep.subr.mxu0 0.0
        %374 = vmatpush1.msra.mxu0 0.0
        %375 = vmatprep.subr.mxu0 0.0
        %376 = vmatpush1.msra.mxu0 0.0
        %377 = vmatprep.subr.mxu0 0.0
        %378 = vmatpush1.msra.mxu0 0.0
        %379 = vmatprep.subr.mxu0 0.0
        %380 = vmatpush1.msra.mxu0 0.0
        %381 = vmatprep.subr.mxu0 0.0
        %382 = vmatpush1.msra.mxu0 0.0
        %383 = vmatprep.subr.mxu0 0.0
        %384 = vmatpush1.msra.mxu0 0.0
        %385 = vmatprep.subr.mxu0 0.0
        %386 = vmatpush1.msra.mxu0 0.0
        %387 = vmatprep.subr.mxu0 0.0
        %388 = vmatpush1.msra.mxu0 0.0
        %389 = vmatprep.subr.mxu0 0.0
        %390 = vmatpush1.msra.mxu0 0.0
        %391 = vmatprep.subr.mxu0 0.0
        %392 = vmatpush1.msra.mxu0 0.0
        %393 = vmatprep.subr.mxu0 0.0
        %394 = vmatpush1.msra.mxu0 0.0
        %395 = vmatprep.mubr.f32.mxu0 0.0
        %396 = vmatmul.mubr.f32.gmra.mrb[0].mxu0 %v319
        %v397 = vpop.f32.mrb[0].mxu0
        %v398 = vadd.f32 %v211, %v397
        %v399 = vpop.f32.mrb[0].mxu0
        %v400 = vadd.f32 %v211, %v399
        %401 = vmatprep.mubr.f32.mxu0 0.0
        %402 = vmatmul.mubr.f32.gmra.mrb[0].mxu0 %v321
        %v403 = vpop.f32.mrb[0].mxu0
        %v404 = vadd.f32 %v216, %v403
        %v405 = vpop.f32.mrb[0].mxu0
        %v406 = vadd.f32 %v216, %v405
        %407 = vmatprep.mubr.f32.mxu0 0.0
        %408 = vmatmul.mubr.f32.gmra.mrb[0].mxu0 %v323
        %v409 = vpop.f32.mrb[0].mxu0
        %v410 = vadd.f32 %v221, %v409
        %v411 = vpop.f32.mrb[0].mxu0
        %v412 = vadd.f32 %v221, %v411
        %413 = vmatprep.mubr.f32.mxu0 0.0
        %414 = vmatmul.mubr.f32.gmra.mrb[0].mxu0 %v325
        %v415 = vpop.f32.mrb[0].mxu0
        %v416 = vadd.f32 %v226, %v415
        %v417 = vpop.f32.mrb[0].mxu0
        %v418 = vadd.f32 %v226, %v417
        %419 = vmatprep.mubr.f32.mxu0 0.0
        %420 = vmatmul.mubr.f32.gmra.mrb[0].mxu0 %v327
        %v421 = vpop.f32.mrb[0].mxu0
        %v422 = vadd.f32 %v231, %v421
        %v423 = vpop.f32.mrb[0].mxu0
        %v424 = vadd.f32 %v231, %v423
        %425 = vmatprep.mubr.f32.mxu0 0.0
        %426 = vmatmul.mubr.f32.gmra.mrb[0].mxu0 %v329
        %v427 = vpop.f32.mrb[0].mxu0
        %v428 = vadd.f32 %v236, %v427
        %v429 = vpop.f32.mrb[0].mxu0
        %v430 = vadd.f32 %v236, %v429
        %431 = vdwg.mxu0
        %v432 = vmax.f32 %v398, 0.0
        %v433 = vmax.f32 %v400, 0.0
        %v434 = vmax.f32 %v404, 0.0
        %v435 = vmax.f32 %v406, 0.0
        %v436 = vmax.f32 %v410, 0.0
        %v437 = vmax.f32 %v412, 0.0
        %v438 = vmax.f32 %v416, 0.0
        %v439 = vmax.f32 %v418, 0.0
        %v440 = vmax.f32 %v422, 0.0
        %v441 = vmax.f32 %v424, 0.0
        %v442 = vmax.f32 %v428, 0.0
        %v443 = vmax.f32 %v430, 0.0
        %444 = vxpose.xlu0.b32.start [1/16] %v442, 128
        %445 = vxpose.xlu0.b32.cont [2/16] 0.0, 128
        %446 = vxpose.xlu0.b32.cont [3/16] 0.0, 128
        %447 = vxpose.xlu0.b32.cont [4/16] 0.0, 128
        %448 = vxpose.xlu0.b32.cont [5/16] 0.0, 128
        %449 = vxpose.xlu0.b32.cont [6/16] 0.0, 128
        %450 = vxpose.xlu0.b32.cont [7/16] 0.0, 128
        %451 = vxpose.xlu0.b32.cont [8/16] 0.0, 128
        %452 = vxpose.xlu0.b32.cont [9/16] 0.0, 128
        %453 = vxpose.xlu0.b32.cont [10/16] 0.0, 128
        %454 = vxpose.xlu0.b32.cont [11/16] 0.0, 128
        %455 = vxpose.xlu0.b32.cont [12/16] 0.0, 128
        %456 = vxpose.xlu0.b32.cont [13/16] 0.0, 128
        %457 = vxpose.xlu0.b32.cont [14/16] 0.0, 128
        %458 = vxpose.xlu0.b32.cont [15/16] 0.0, 128
        %459 = vxpose.xlu0.b32.end [16/16] 0.0, 128
        %v460 = vpop.trf.xlu0
        %v461 = vpop.trf.xlu0
        %v462 = vpop.trf.xlu0
        %v463 = vpop.trf.xlu0
        %v464 = vpop.trf.xlu0
        %v465 = vpop.trf.xlu0
        %v466 = vpop.trf.xlu0
        %v467 = vpop.trf.xlu0
        %v468 = vpop.trf.xlu0
        %v469 = vpop.trf.xlu0
        %v470 = vpop.trf.xlu0
        %v471 = vpop.trf.xlu0
        %v472 = vpop.trf.xlu0
        %v473 = vpop.trf.xlu0
        %v474 = vpop.trf.xlu0
        %v475 = vpop.trf.xlu0
        %476 = vxpose.xlu0.b32.start [1/16] %v443, 128
        %477 = vxpose.xlu0.b32.cont [2/16] 0.0, 128
        %478 = vxpose.xlu0.b32.cont [3/16] 0.0, 128
        %479 = vxpose.xlu0.b32.cont [4/16] 0.0, 128
        %480 = vxpose.xlu0.b32.cont [5/16] 0.0, 128
        %481 = vxpose.xlu0.b32.cont [6/16] 0.0, 128
        %482 = vxpose.xlu0.b32.cont [7/16] 0.0, 128
        %483 = vxpose.xlu0.b32.cont [8/16] 0.0, 128
        %484 = vxpose.xlu0.b32.cont [9/16] 0.0, 128
        %485 = vxpose.xlu0.b32.cont [10/16] 0.0, 128
        %486 = vxpose.xlu0.b32.cont [11/16] 0.0, 128
        %487 = vxpose.xlu0.b32.cont [12/16] 0.0, 128
        %488 = vxpose.xlu0.b32.cont [13/16] 0.0, 128
        %489 = vxpose.xlu0.b32.cont [14/16] 0.0, 128
        %490 = vxpose.xlu0.b32.cont [15/16] 0.0, 128
        %491 = vxpose.xlu0.b32.end [16/16] 0.0, 128
        %v492 = vpop.trf.xlu0
        %v493 = vpop.trf.xlu0
        %v494 = vpop.trf.xlu0
        %v495 = vpop.trf.xlu0
        %v496 = vpop.trf.xlu0
        %v497 = vpop.trf.xlu0
        %v498 = vpop.trf.xlu0
        %v499 = vpop.trf.xlu0
        %v500 = vpop.trf.xlu0
        %v501 = vpop.trf.xlu0
        %v502 = vpop.trf.xlu0
        %v503 = vpop.trf.xlu0
        %v504 = vpop.trf.xlu0
        %v505 = vpop.trf.xlu0
        %v506 = vpop.trf.xlu0
        %v507 = vpop.trf.xlu0
        %vm508 = vcmask 64512
        %v510 = vsel %vm508, %v460, 0
        %v513 = vsel %vm508, %v461, 0
        %v516 = vsel %vm508, %v462, 0
        %v519 = vsel %vm508, %v463, 0
        %v522 = vsel %vm508, %v464, 0
        %v525 = vsel %vm508, %v465, 0
        %v528 = vsel %vm508, %v466, 0
        %v531 = vsel %vm508, %v467, 0
        %v534 = vsel %vm508, %v468, 0
        %v537 = vsel %vm508, %v469, 0
        %v540 = vsel %vm508, %v470, 0
        %v543 = vsel %vm508, %v471, 0
        %v546 = vsel %vm508, %v472, 0
        %v549 = vsel %vm508, %v473, 0
        %v552 = vsel %vm508, %v474, 0
        %v555 = vsel %vm508, %v475, 0
        %v558 = vsel %vm508, %v492, 0
        %v561 = vsel %vm508, %v493, 0
        %v564 = vsel %vm508, %v494, 0
        %v567 = vsel %vm508, %v495, 0
        %v570 = vsel %vm508, %v496, 0
        %v573 = vsel %vm508, %v497, 0
        %v576 = vsel %vm508, %v498, 0
        %v579 = vsel %vm508, %v499, 0
        %v582 = vsel %vm508, %v500, 0
        %v585 = vsel %vm508, %v501, 0
        %v588 = vsel %vm508, %v502, 0
        %v591 = vsel %vm508, %v503, 0
        %v594 = vsel %vm508, %v504, 0
        %v597 = vsel %vm508, %v505, 0
        %v600 = vsel %vm508, %v506, 0
        %v603 = vsel %vm508, %v507, 0
        %605 = vmatprep.subr.mxu0 %v441
        %606 = vmatpush1.msra.mxu0 %v440
        %607 = vmatprep.subr.mxu0 0.0
        %608 = vmatpush1.msra.mxu0 0.0
        %609 = vmatprep.subr.mxu0 0.0
        %610 = vmatpush1.msra.mxu0 0.0
        %611 = vmatprep.subr.mxu0 0.0
        %612 = vmatpush1.msra.mxu0 0.0
        %613 = vmatprep.subr.mxu0 0.0
        %614 = vmatpush1.msra.mxu0 0.0
        %615 = vmatprep.subr.mxu0 0.0
        %616 = vmatpush1.msra.mxu0 0.0
        %617 = vmatprep.subr.mxu0 0.0
        %618 = vmatpush1.msra.mxu0 0.0
        %619 = vmatprep.subr.mxu0 0.0
        %620 = vmatpush1.msra.mxu0 0.0
        %621 = vmatprep.subr.mxu0 0.0
        %622 = vmatpush1.msra.mxu0 0.0
        %623 = vmatprep.subr.mxu0 0.0
        %624 = vmatpush1.msra.mxu0 0.0
        %625 = vmatprep.subr.mxu0 0.0
        %626 = vmatpush1.msra.mxu0 0.0
        %627 = vmatprep.subr.mxu0 0.0
        %628 = vmatpush1.msra.mxu0 0.0
        %629 = vmatprep.subr.mxu0 0.0
        %630 = vmatpush1.msra.mxu0 0.0
        %631 = vmatprep.subr.mxu0 0.0
        %632 = vmatpush1.msra.mxu0 0.0
        %633 = vmatprep.subr.mxu0 0.0
        %634 = vmatpush1.msra.mxu0 0.0
        %635 = vmatprep.subr.mxu0 0.0
        %636 = vmatpush1.msra.mxu0 0.0
        %637 = vmatprep.subr.mxu0 0.0
        %638 = vmatpush1.msra.mxu0 0.0
        %639 = vmatprep.subr.mxu0 0.0
        %640 = vmatpush1.msra.mxu0 0.0
        %641 = vmatprep.subr.mxu0 0.0
        %642 = vmatpush1.msra.mxu0 0.0
        %643 = vmatprep.subr.mxu0 0.0
        %644 = vmatpush1.msra.mxu0 0.0
        %645 = vmatprep.subr.mxu0 0.0
        %646 = vmatpush1.msra.mxu0 0.0
        %647 = vmatprep.subr.mxu0 0.0
        %648 = vmatpush1.msra.mxu0 0.0
        %649 = vmatprep.subr.mxu0 0.0
        %650 = vmatpush1.msra.mxu0 0.0
        %651 = vmatprep.subr.mxu0 0.0
        %652 = vmatpush1.msra.mxu0 0.0
        %653 = vmatprep.subr.mxu0 0.0
        %654 = vmatpush1.msra.mxu0 0.0
        %655 = vmatprep.subr.mxu0 0.0
        %656 = vmatpush1.msra.mxu0 0.0
        %657 = vmatprep.subr.mxu0 0.0
        %658 = vmatpush1.msra.mxu0 0.0
        %659 = vmatprep.subr.mxu0 0.0
        %660 = vmatpush1.msra.mxu0 0.0
        %661 = vmatprep.subr.mxu0 0.0
        %662 = vmatpush1.msra.mxu0 0.0
        %663 = vmatprep.subr.mxu0 0.0
        %664 = vmatpush1.msra.mxu0 0.0
        %665 = vmatprep.subr.mxu0 0.0
        %666 = vmatpush1.msra.mxu0 0.0
        %667 = vmatprep.subr.mxu0 0.0
        %668 = vmatpush1.msra.mxu0 0.0
        %669 = vmatprep.mubr.f32.mxu0 0.0
        %670 = vmatmul.mubr.f32.gmra.mrb[0].mxu0 %v510
        %v671 = vpop.f32.mrb[0].mxu0
        %v672 = vadd.f32 0.0, %v671
        %v673 = vpop.f32.mrb[0].mxu0
        %v674 = vadd.f32 0.0, %v673
        %675 = vmatprep.mubr.f32.mxu0 0.0
        %676 = vmatmul.mubr.f32.gmra.mrb[0].mxu0 %v513
        %v677 = vpop.f32.mrb[0].mxu0
        %v678 = vadd.f32 0.0, %v677
        %v679 = vpop.f32.mrb[0].mxu0
        %v680 = vadd.f32 0.0, %v679
        %681 = vmatprep.mubr.f32.mxu0 0.0
        %682 = vmatmul.mubr.f32.gmra.mrb[0].mxu0 %v516
        %v683 = vpop.f32.mrb[0].mxu0
        %v684 = vadd.f32 0.0, %v683
        %v685 = vpop.f32.mrb[0].mxu0
        %v686 = vadd.f32 0.0, %v685
        %687 = vmatprep.mubr.f32.mxu0 0.0
        %688 = vmatmul.mubr.f32.gmra.mrb[0].mxu0 %v519
        %v689 = vpop.f32.mrb[0].mxu0
        %v690 = vadd.f32 0.0, %v689
        %v691 = vpop.f32.mrb[0].mxu0
        %v692 = vadd.f32 0.0, %v691
        %693 = vmatprep.mubr.f32.mxu0 0.0
        %694 = vmatmul.mubr.f32.gmra.mrb[0].mxu0 %v522
        %v695 = vpop.f32.mrb[0].mxu0
        %v696 = vadd.f32 0.0, %v695
        %v697 = vpop.f32.mrb[0].mxu0
        %v698 = vadd.f32 0.0, %v697
        %699 = vmatprep.mubr.f32.mxu0 0.0
        %700 = vmatmul.mubr.f32.gmra.mrb[0].mxu0 %v525
        %v701 = vpop.f32.mrb[0].mxu0
        %v702 = vadd.f32 0.0, %v701
        %v703 = vpop.f32.mrb[0].mxu0
        %v704 = vadd.f32 0.0, %v703
        %705 = vmatprep.mubr.f32.mxu0 0.0
        %706 = vmatmul.mubr.f32.gmra.mrb[0].mxu0 %v528
        %v707 = vpop.f32.mrb[0].mxu0
        %v708 = vadd.f32 0.0, %v707
        %v709 = vpop.f32.mrb[0].mxu0
        %v710 = vadd.f32 0.0, %v709
        %711 = vmatprep.mubr.f32.mxu0 0.0
        %712 = vmatmul.mubr.f32.gmra.mrb[0].mxu0 %v531
        %v713 = vpop.f32.mrb[0].mxu0
        %v714 = vadd.f32 0.0, %v713
        %v715 = vpop.f32.mrb[0].mxu0
        %v716 = vadd.f32 0.0, %v715
        %717 = vmatprep.mubr.f32.mxu0 0.0
        %718 = vmatmul.mubr.f32.gmra.mrb[0].mxu0 %v534
        %v719 = vpop.f32.mrb[0].mxu0
        %v720 = vadd.f32 0.0, %v719
        %v721 = vpop.f32.mrb[0].mxu0
        %v722 = vadd.f32 0.0, %v721
        %723 = vmatprep.mubr.f32.mxu0 0.0
        %724 = vmatmul.mubr.f32.gmra.mrb[0].mxu0 %v537
        %v725 = vpop.f32.mrb[0].mxu0
        %v726 = vadd.f32 0.0, %v725
        %v727 = vpop.f32.mrb[0].mxu0
        %v728 = vadd.f32 0.0, %v727
        %729 = vmatprep.mubr.f32.mxu0 0.0
        %730 = vmatmul.mubr.f32.gmra.mrb[0].mxu0 %v540
        %v731 = vpop.f32.mrb[0].mxu0
        %v732 = vadd.f32 0.0, %v731
        %v733 = vpop.f32.mrb[0].mxu0
        %v734 = vadd.f32 0.0, %v733
        %735 = vmatprep.mubr.f32.mxu0 0.0
        %736 = vmatmul.mubr.f32.gmra.mrb[0].mxu0 %v543
        %v737 = vpop.f32.mrb[0].mxu0
        %v738 = vadd.f32 0.0, %v737
        %v739 = vpop.f32.mrb[0].mxu0
        %v740 = vadd.f32 0.0, %v739
        %741 = vmatprep.mubr.f32.mxu0 0.0
        %742 = vmatmul.mubr.f32.gmra.mrb[0].mxu0 %v546
        %v743 = vpop.f32.mrb[0].mxu0
        %v744 = vadd.f32 0.0, %v743
        %v745 = vpop.f32.mrb[0].mxu0
        %v746 = vadd.f32 0.0, %v745
        %747 = vmatprep.mubr.f32.mxu0 0.0
        %748 = vmatmul.mubr.f32.gmra.mrb[0].mxu0 %v549
        %v749 = vpop.f32.mrb[0].mxu0
        %v750 = vadd.f32 0.0, %v749
        %v751 = vpop.f32.mrb[0].mxu0
        %v752 = vadd.f32 0.0, %v751
        %753 = vmatprep.mubr.f32.mxu0 0.0
        %754 = vmatmul.mubr.f32.gmra.mrb[0].mxu0 %v552
        %v755 = vpop.f32.mrb[0].mxu0
        %v756 = vadd.f32 0.0, %v755
        %v757 = vpop.f32.mrb[0].mxu0
        %v758 = vadd.f32 0.0, %v757
        %759 = vmatprep.mubr.f32.mxu0 0.0
        %760 = vmatmul.mubr.f32.gmra.mrb[0].mxu0 %v555
        %v761 = vpop.f32.mrb[0].mxu0
        %v762 = vadd.f32 0.0, %v761
        %v763 = vpop.f32.mrb[0].mxu0
        %v764 = vadd.f32 0.0, %v763
        %765 = vmatprep.mubr.f32.mxu0 0.0
        %766 = vmatmul.mubr.f32.gmra.mrb[0].mxu0 %v558
        %v767 = vpop.f32.mrb[0].mxu0
        %v768 = vadd.f32 0.0, %v767
        %v769 = vpop.f32.mrb[0].mxu0
        %v770 = vadd.f32 0.0, %v769
        %771 = vmatprep.mubr.f32.mxu0 0.0
        %772 = vmatmul.mubr.f32.gmra.mrb[0].mxu0 %v561
        %v773 = vpop.f32.mrb[0].mxu0
        %v774 = vadd.f32 0.0, %v773
        %v775 = vpop.f32.mrb[0].mxu0
        %v776 = vadd.f32 0.0, %v775
        %777 = vmatprep.mubr.f32.mxu0 0.0
        %778 = vmatmul.mubr.f32.gmra.mrb[0].mxu0 %v564
        %v779 = vpop.f32.mrb[0].mxu0
        %v780 = vadd.f32 0.0, %v779
        %v781 = vpop.f32.mrb[0].mxu0
        %v782 = vadd.f32 0.0, %v781
        %783 = vmatprep.mubr.f32.mxu0 0.0
        %784 = vmatmul.mubr.f32.gmra.mrb[0].mxu0 %v567
        %v785 = vpop.f32.mrb[0].mxu0
        %v786 = vadd.f32 0.0, %v785
        %v787 = vpop.f32.mrb[0].mxu0
        %v788 = vadd.f32 0.0, %v787
        %789 = vmatprep.mubr.f32.mxu0 0.0
        %790 = vmatmul.mubr.f32.gmra.mrb[0].mxu0 %v570
        %v791 = vpop.f32.mrb[0].mxu0
        %v792 = vadd.f32 0.0, %v791
        %v793 = vpop.f32.mrb[0].mxu0
        %v794 = vadd.f32 0.0, %v793
        %795 = vmatprep.mubr.f32.mxu0 0.0
        %796 = vmatmul.mubr.f32.gmra.mrb[0].mxu0 %v573
        %v797 = vpop.f32.mrb[0].mxu0
        %v798 = vadd.f32 0.0, %v797
        %v799 = vpop.f32.mrb[0].mxu0
        %v800 = vadd.f32 0.0, %v799
        %801 = vmatprep.mubr.f32.mxu0 0.0
        %802 = vmatmul.mubr.f32.gmra.mrb[0].mxu0 %v576
        %v803 = vpop.f32.mrb[0].mxu0
        %v804 = vadd.f32 0.0, %v803
        %v805 = vpop.f32.mrb[0].mxu0
        %v806 = vadd.f32 0.0, %v805
        %807 = vmatprep.mubr.f32.mxu0 0.0
        %808 = vmatmul.mubr.f32.gmra.mrb[0].mxu0 %v579
        %v809 = vpop.f32.mrb[0].mxu0
        %v810 = vadd.f32 0.0, %v809
        %v811 = vpop.f32.mrb[0].mxu0
        %v812 = vadd.f32 0.0, %v811
        %813 = vmatprep.mubr.f32.mxu0 0.0
        %814 = vmatmul.mubr.f32.gmra.mrb[0].mxu0 %v582
        %v815 = vpop.f32.mrb[0].mxu0
        %v816 = vadd.f32 0.0, %v815
        %v817 = vpop.f32.mrb[0].mxu0
        %v818 = vadd.f32 0.0, %v817
        %819 = vmatprep.mubr.f32.mxu0 0.0
        %820 = vmatmul.mubr.f32.gmra.mrb[0].mxu0 %v585
        %v821 = vpop.f32.mrb[0].mxu0
        %v822 = vadd.f32 0.0, %v821
        %v823 = vpop.f32.mrb[0].mxu0
        %v824 = vadd.f32 0.0, %v823
        %825 = vmatprep.mubr.f32.mxu0 0.0
        %826 = vmatmul.mubr.f32.gmra.mrb[0].mxu0 %v588
        %v827 = vpop.f32.mrb[0].mxu0
        %v828 = vadd.f32 0.0, %v827
        %v829 = vpop.f32.mrb[0].mxu0
        %v830 = vadd.f32 0.0, %v829
        %831 = vmatprep.mubr.f32.mxu0 0.0
        %832 = vmatmul.mubr.f32.gmra.mrb[0].mxu0 %v591
        %v833 = vpop.f32.mrb[0].mxu0
        %v834 = vadd.f32 0.0, %v833
        %v835 = vpop.f32.mrb[0].mxu0
        %v836 = vadd.f32 0.0, %v835
        %837 = vmatprep.mubr.f32.mxu0 0.0
        %838 = vmatmul.mubr.f32.gmra.mrb[0].mxu0 %v594
        %v839 = vpop.f32.mrb[0].mxu0
        %v840 = vadd.f32 0.0, %v839
        %v841 = vpop.f32.mrb[0].mxu0
        %v842 = vadd.f32 0.0, %v841
        %843 = vmatprep.mubr.f32.mxu0 0.0
        %844 = vmatmul.mubr.f32.gmra.mrb[0].mxu0 %v597
        %v845 = vpop.f32.mrb[0].mxu0
        %v846 = vadd.f32 0.0, %v845
        %v847 = vpop.f32.mrb[0].mxu0
        %v848 = vadd.f32 0.0, %v847
        %849 = vmatprep.mubr.f32.mxu0 0.0
        %850 = vmatmul.mubr.f32.gmra.mrb[0].mxu0 %v600
        %v851 = vpop.f32.mrb[0].mxu0
        %v852 = vadd.f32 0.0, %v851
        %v853 = vpop.f32.mrb[0].mxu0
        %v854 = vadd.f32 0.0, %v853
        %855 = vmatprep.mubr.f32.mxu0 0.0
        %856 = vmatmul.mubr.f32.gmra.mrb[0].mxu0 %v603
        %v857 = vpop.f32.mrb[0].mxu0
        %v858 = vadd.f32 0.0, %v857
        %v859 = vpop.f32.mrb[0].mxu0
        %v860 = vadd.f32 0.0, %v859
        %861 = vdwg.mxu0
        %v862 = vmax.f32 %v672, %v684
        %v863 = vmax.f32 %v678, %v690
        %v864 = vmax.f32 %v862, %v696
        %v865 = vmax.f32 %v863, %v702
        %v866 = vmax.f32 %v864, %v708
        %v867 = vmax.f32 %v865, %v714
        %v868 = vmax.f32 %v866, %v720
        %v869 = vmax.f32 %v867, %v726
        %v870 = vmax.f32 %v868, %v732
        %v871 = vmax.f32 %v869, %v738
        %v872 = vmax.f32 %v870, %v744
        %v873 = vmax.f32 %v871, %v750
        %v874 = vmax.f32 %v872, %v756
        %v875 = vmax.f32 %v873, %v762
        %v876 = vmax.f32 %v874, %v768
        %v877 = vmax.f32 %v875, %v774
        %v878 = vmax.f32 %v876, %v780
        %v879 = vmax.f32 %v877, %v786
        %v880 = vmax.f32 %v878, %v792
        %v881 = vmax.f32 %v879, %v798
        %v882 = vmax.f32 %v880, %v804
        %v883 = vmax.f32 %v881, %v810
        %v884 = vmax.f32 %v882, %v816
        %v885 = vmax.f32 %v883, %v822
        %v886 = vmax.f32 %v884, %v828
        %v887 = vmax.f32 %v885, %v834
        %v888 = vmax.f32 %v886, %v840
        %v889 = vmax.f32 %v887, %v846
        %v890 = vmax.f32 %v888, %v852
        %v891 = vmax.f32 %v889, %v858
        %v892 = vmax.f32 %v890, %v891
        %v893 = vrot.slane %v892, 4
        %v894 = vmax.f32 %v892, %v893
        %v895 = vrot.slane %v894, 2
        %v896 = vmax.f32 %v894, %v895
        %v897 = vrot.slane %v896, 1
        %v898 = vmax.f32 %v896, %v897
        %v899 = vmax.f32 %v674, %v686
        %v900 = vmax.f32 %v680, %v692
        %v901 = vmax.f32 %v899, %v698
        %v902 = vmax.f32 %v900, %v704
        %v903 = vmax.f32 %v901, %v710
        %v904 = vmax.f32 %v902, %v716
        %v905 = vmax.f32 %v903, %v722
        %v906 = vmax.f32 %v904, %v728
        %v907 = vmax.f32 %v905, %v734
        %v908 = vmax.f32 %v906, %v740
        %v909 = vmax.f32 %v907, %v746
        %v910 = vmax.f32 %v908, %v752
        %v911 = vmax.f32 %v909, %v758
        %v912 = vmax.f32 %v910, %v764
        %v913 = vmax.f32 %v911, %v770
        %v914 = vmax.f32 %v912, %v776
        %v915 = vmax.f32 %v913, %v782
        %v916 = vmax.f32 %v914, %v788
        %v917 = vmax.f32 %v915, %v794
        %v918 = vmax.f32 %v916, %v800
        %v919 = vmax.f32 %v917, %v806
        %v920 = vmax.f32 %v918, %v812
        %v921 = vmax.f32 %v919, %v818
        %v922 = vmax.f32 %v920, %v824
        %v923 = vmax.f32 %v921, %v830
        %v924 = vmax.f32 %v922, %v836
        %v925 = vmax.f32 %v923, %v842
        %v926 = vmax.f32 %v924, %v848
        %v927 = vmax.f32 %v925, %v854
        %v928 = vmax.f32 %v926, %v860
        %v929 = vmax.f32 %v927, %v928
        %v930 = vrot.slane %v929, 4
        %v931 = vmax.f32 %v929, %v930
        %v932 = vrot.slane %v931, 2
        %v933 = vmax.f32 %v931, %v932
        %v934 = vrot.slane %v933, 1
        %v935 = vmax.f32 %v933, %v934
        %v936 = vsub.f32 %v672, %v898
        %v937 = vsub.f32 %v674, %v935
        %v938 = vsub.f32 %v678, %v898
        %v939 = vsub.f32 %v680, %v935
        %v940 = vsub.f32 %v684, %v898
        %v941 = vsub.f32 %v686, %v935
        %v942 = vsub.f32 %v690, %v898
        %v943 = vsub.f32 %v692, %v935
        %v944 = vsub.f32 %v696, %v898
        %v945 = vsub.f32 %v698, %v935
        %v946 = vsub.f32 %v702, %v898
        %v947 = vsub.f32 %v704, %v935
        %v948 = vsub.f32 %v708, %v898
        %v949 = vsub.f32 %v710, %v935
        %v950 = vsub.f32 %v714, %v898
        %v951 = vsub.f32 %v716, %v935
        %v952 = vsub.f32 %v720, %v898
        %v953 = vsub.f32 %v722, %v935
        %v954 = vsub.f32 %v726, %v898
        %v955 = vsub.f32 %v728, %v935
        %v956 = vsub.f32 %v732, %v898
        %v957 = vsub.f32 %v734, %v935
        %v958 = vsub.f32 %v738, %v898
        %v959 = vsub.f32 %v740, %v935
        %v960 = vsub.f32 %v744, %v898
        %v961 = vsub.f32 %v746, %v935
        %v962 = vsub.f32 %v750, %v898
        %v963 = vsub.f32 %v752, %v935
        %v964 = vsub.f32 %v756, %v898
        %v965 = vsub.f32 %v758, %v935
        %v966 = vsub.f32 %v762, %v898
        %v967 = vsub.f32 %v764, %v935
        %v968 = vsub.f32 %v768, %v898
        %v969 = vsub.f32 %v770, %v935
        %v970 = vsub.f32 %v774, %v898
        %v971 = vsub.f32 %v776, %v935
        %v972 = vsub.f32 %v780, %v898
        %v973 = vsub.f32 %v782, %v935
        %v974 = vsub.f32 %v786, %v898
        %v975 = vsub.f32 %v788, %v935
        %v976 = vsub.f32 %v792, %v898
        %v977 = vsub.f32 %v794, %v935
        %v978 = vsub.f32 %v798, %v898
        %v979 = vsub.f32 %v800, %v935
        %v980 = vsub.f32 %v804, %v898
        %v981 = vsub.f32 %v806, %v935
        %v982 = vsub.f32 %v810, %v898
        %v983 = vsub.f32 %v812, %v935
        %v984 = vsub.f32 %v816, %v898
        %v985 = vsub.f32 %v818, %v935
        %v986 = vsub.f32 %v822, %v898
        %v987 = vsub.f32 %v824, %v935
        %v988 = vsub.f32 %v828, %v898
        %v989 = vsub.f32 %v830, %v935
        %v990 = vsub.f32 %v834, %v898
        %v991 = vsub.f32 %v836, %v935
        %v992 = vsub.f32 %v840, %v898
        %v993 = vsub.f32 %v842, %v935
        %v994 = vsub.f32 %v846, %v898
        %v995 = vsub.f32 %v848, %v935
        %v996 = vsub.f32 %v852, %v898
        %v997 = vsub.f32 %v854, %v935
        %v998 = vsub.f32 %v858, %v898
        %v999 = vsub.f32 %v860, %v935
        %v1000 = vmul.f32 %v936, 1.442695
        %v1001 = vpow.pop %v1000
        %v1002 = vmul.f32 %v937, 1.442695
        %v1003 = vpow.pop %v1002
        %v1004 = vmul.f32 %v938, 1.442695
        %v1005 = vpow.pop %v1004
        %v1006 = vmul.f32 %v939, 1.442695
        %v1007 = vpow.pop %v1006
        %v1008 = vmul.f32 %v940, 1.442695
        %v1009 = vpow.pop %v1008
        %v1010 = vmul.f32 %v941, 1.442695
        %v1011 = vpow.pop %v1010
        %v1012 = vmul.f32 %v942, 1.442695
        %v1013 = vpow.pop %v1012
        %v1014 = vmul.f32 %v943, 1.442695
        %v1015 = vpow.pop %v1014
        %v1016 = vmul.f32 %v944, 1.442695
        %v1017 = vpow.pop %v1016
        %v1018 = vmul.f32 %v945, 1.442695
        %v1019 = vpow.pop %v1018
        %v1020 = vmul.f32 %v946, 1.442695
        %v1021 = vpow.pop %v1020
        %v1022 = vmul.f32 %v947, 1.442695
        %v1023 = vpow.pop %v1022
        %v1024 = vmul.f32 %v948, 1.442695
        %v1025 = vpow.pop %v1024
        %v1026 = vmul.f32 %v949, 1.442695
        %v1027 = vpow.pop %v1026
        %v1028 = vmul.f32 %v950, 1.442695
        %v1029 = vpow.pop %v1028
        %v1030 = vmul.f32 %v951, 1.442695
        %v1031 = vpow.pop %v1030
        %v1032 = vmul.f32 %v952, 1.442695
        %v1033 = vpow.pop %v1032
        %v1034 = vmul.f32 %v953, 1.442695
        %v1035 = vpow.pop %v1034
        %v1036 = vmul.f32 %v954, 1.442695
        %v1037 = vpow.pop %v1036
        %v1038 = vmul.f32 %v955, 1.442695
        %v1039 = vpow.pop %v1038
        %v1040 = vmul.f32 %v956, 1.442695
        %v1041 = vpow.pop %v1040
        %v1042 = vmul.f32 %v957, 1.442695
        %v1043 = vpow.pop %v1042
        %v1044 = vmul.f32 %v958, 1.442695
        %v1045 = vpow.pop %v1044
        %v1046 = vmul.f32 %v959, 1.442695
        %v1047 = vpow.pop %v1046
        %v1048 = vmul.f32 %v960, 1.442695
        %v1049 = vpow.pop %v1048
        %v1050 = vmul.f32 %v961, 1.442695
        %v1051 = vpow.pop %v1050
        %v1052 = vmul.f32 %v962, 1.442695
        %v1053 = vpow.pop %v1052
        %v1054 = vmul.f32 %v963, 1.442695
        %v1055 = vpow.pop %v1054
        %v1056 = vmul.f32 %v964, 1.442695
        %v1057 = vpow.pop %v1056
        %v1058 = vmul.f32 %v965, 1.442695
        %v1059 = vpow.pop %v1058
        %v1060 = vmul.f32 %v966, 1.442695
        %v1061 = vpow.pop %v1060
        %v1062 = vmul.f32 %v967, 1.442695
        %v1063 = vpow.pop %v1062
        %v1064 = vmul.f32 %v968, 1.442695
        %v1065 = vpow.pop %v1064
        %v1066 = vmul.f32 %v969, 1.442695
        %v1067 = vpow.pop %v1066
        %v1068 = vmul.f32 %v970, 1.442695
        %v1069 = vpow.pop %v1068
        %v1070 = vmul.f32 %v971, 1.442695
        %v1071 = vpow.pop %v1070
        %v1072 = vmul.f32 %v972, 1.442695
        %v1073 = vpow.pop %v1072
        %v1074 = vmul.f32 %v973, 1.442695
        %v1075 = vpow.pop %v1074
        %v1076 = vmul.f32 %v974, 1.442695
        %v1077 = vpow.pop %v1076
        %v1078 = vmul.f32 %v975, 1.442695
        %v1079 = vpow.pop %v1078
        %v1080 = vmul.f32 %v976, 1.442695
        %v1081 = vpow.pop %v1080
        %v1082 = vmul.f32 %v977, 1.442695
        %v1083 = vpow.pop %v1082
        %v1084 = vmul.f32 %v978, 1.442695
        %v1085 = vpow.pop %v1084
        %v1086 = vmul.f32 %v979, 1.442695
        %v1087 = vpow.pop %v1086
        %v1088 = vmul.f32 %v980, 1.442695
        %v1089 = vpow.pop %v1088
        %v1090 = vmul.f32 %v981, 1.442695
        %v1091 = vpow.pop %v1090
        %v1092 = vmul.f32 %v982, 1.442695
        %v1093 = vpow.pop %v1092
        %v1094 = vmul.f32 %v983, 1.442695
        %v1095 = vpow.pop %v1094
        %v1096 = vmul.f32 %v984, 1.442695
        %v1097 = vpow.pop %v1096
        %v1098 = vmul.f32 %v985, 1.442695
        %v1099 = vpow.pop %v1098
        %v1100 = vmul.f32 %v986, 1.442695
        %v1101 = vpow.pop %v1100
        %v1102 = vmul.f32 %v987, 1.442695
        %v1103 = vpow.pop %v1102
        %v1104 = vmul.f32 %v988, 1.442695
        %v1105 = vpow.pop %v1104
        %v1106 = vmul.f32 %v989, 1.442695
        %v1107 = vpow.pop %v1106
        %v1108 = vmul.f32 %v990, 1.442695
        %v1109 = vpow.pop %v1108
        %v1110 = vmul.f32 %v991, 1.442695
        %v1111 = vpow.pop %v1110
        %v1112 = vmul.f32 %v992, 1.442695
        %v1113 = vpow.pop %v1112
        %v1114 = vmul.f32 %v993, 1.442695
        %v1115 = vpow.pop %v1114
        %v1116 = vmul.f32 %v994, 1.442695
        %v1117 = vpow.pop %v1116
        %v1118 = vmul.f32 %v995, 1.442695
        %v1119 = vpow.pop %v1118
        %v1120 = vmul.f32 %v996, 1.442695
        %v1121 = vpow.pop %v1120
        %v1122 = vmul.f32 %v997, 1.442695
        %v1123 = vpow.pop %v1122
        %v1124 = vmul.f32 %v998, 1.442695
        %v1125 = vpow.pop %v1124
        %v1126 = vmul.f32 %v999, 1.442695
        %v1127 = vpow.pop %v1126
        %v1128 = vadd.f32 %v1001, %v1005
        %v1129 = vadd.f32 %v1128, %v1009
        %v1130 = vadd.f32 %v1129, %v1013
        %v1131 = vadd.f32 %v1130, %v1017
        %v1132 = vadd.f32 %v1131, %v1021
        %v1133 = vadd.f32 %v1132, %v1025
        %v1134 = vadd.f32 %v1133, %v1029
        %v1135 = vadd.f32 %v1134, %v1033
        %v1136 = vadd.f32 %v1135, %v1037
        %v1137 = vadd.f32 %v1136, %v1041
        %v1138 = vadd.f32 %v1137, %v1045
        %v1139 = vadd.f32 %v1138, %v1049
        %v1140 = vadd.f32 %v1139, %v1053
        %v1141 = vadd.f32 %v1140, %v1057
        %v1142 = vadd.f32 %v1141, %v1061
        %v1143 = vadd.f32 %v1142, %v1065
        %v1144 = vadd.f32 %v1143, %v1069
        %v1145 = vadd.f32 %v1144, %v1073
        %v1146 = vadd.f32 %v1145, %v1077
        %v1147 = vadd.f32 %v1146, %v1081
        %v1148 = vadd.f32 %v1147, %v1085
        %v1149 = vadd.f32 %v1148, %v1089
        %v1150 = vadd.f32 %v1149, %v1093
        %v1151 = vadd.f32 %v1150, %v1097
        %v1152 = vadd.f32 %v1151, %v1101
        %v1153 = vadd.f32 %v1152, %v1105
        %v1154 = vadd.f32 %v1153, %v1109
        %v1155 = vadd.f32 %v1154, %v1113
        %v1156 = vadd.f32 %v1155, %v1117
        %v1157 = vadd.f32 %v1156, %v1121
        %v1158 = vadd.f32 %v1157, %v1125
        %v1159 = vrot.slane %v1158, 4
        %v1160 = vadd.f32 %v1158, %v1159
        %v1161 = vrot.slane %v1160, 2
        %v1162 = vadd.f32 %v1160, %v1161
        %v1163 = vrot.slane %v1162, 1
        %v1164 = vadd.f32 %v1162, %v1163
        %v1165 = vadd.f32 %v1003, %v1007
        %v1166 = vadd.f32 %v1165, %v1011
        %v1167 = vadd.f32 %v1166, %v1015
        %v1168 = vadd.f32 %v1167, %v1019
        %v1169 = vadd.f32 %v1168, %v1023
        %v1170 = vadd.f32 %v1169, %v1027
        %v1171 = vadd.f32 %v1170, %v1031
        %v1172 = vadd.f32 %v1171, %v1035
        %v1173 = vadd.f32 %v1172, %v1039
        %v1174 = vadd.f32 %v1173, %v1043
        %v1175 = vadd.f32 %v1174, %v1047
        %v1176 = vadd.f32 %v1175, %v1051
        %v1177 = vadd.f32 %v1176, %v1055
        %v1178 = vadd.f32 %v1177, %v1059
        %v1179 = vadd.f32 %v1178, %v1063
        %v1180 = vadd.f32 %v1179, %v1067
        %v1181 = vadd.f32 %v1180, %v1071
        %v1182 = vadd.f32 %v1181, %v1075
        %v1183 = vadd.f32 %v1182, %v1079
        %v1184 = vadd.f32 %v1183, %v1083
        %v1185 = vadd.f32 %v1184, %v1087
        %v1186 = vadd.f32 %v1185, %v1091
        %v1187 = vadd.f32 %v1186, %v1095
        %v1188 = vadd.f32 %v1187, %v1099
        %v1189 = vadd.f32 %v1188, %v1103
        %v1190 = vadd.f32 %v1189, %v1107
        %v1191 = vadd.f32 %v1190, %v1111
        %v1192 = vadd.f32 %v1191, %v1115
        %v1193 = vadd.f32 %v1192, %v1119
        %v1194 = vadd.f32 %v1193, %v1123
        %v1195 = vadd.f32 %v1194, %v1127
        %v1196 = vrot.slane %v1195, 4
        %v1197 = vadd.f32 %v1195, %v1196
        %v1198 = vrot.slane %v1197, 2
        %v1199 = vadd.f32 %v1197, %v1198
        %v1200 = vrot.slane %v1199, 1
        %v1201 = vadd.f32 %v1199, %v1200
        %v1202 = vrcp.pop %v1164
        %v1203 = vrcp.pop %v1201
        %1204 = vmatprep.subr.mxu0 %v1003
        %1205 = vmatpush1.msra.mxu0 %v1001
        %1206 = vmatprep.subr.mxu0 %v1007
        %1207 = vmatpush1.msra.mxu0 %v1005
        %1208 = vmatprep.subr.mxu0 %v1011
        %1209 = vmatpush1.msra.mxu0 %v1009
        %1210 = vmatprep.subr.mxu0 %v1015
        %1211 = vmatpush1.msra.mxu0 %v1013
        %1212 = vmatprep.subr.mxu0 %v1019
        %1213 = vmatpush1.msra.mxu0 %v1017
        %1214 = vmatprep.subr.mxu0 %v1023
        %1215 = vmatpush1.msra.mxu0 %v1021
        %1216 = vmatprep.subr.mxu0 %v1027
        %1217 = vmatpush1.msra.mxu0 %v1025
        %1218 = vmatprep.subr.mxu0 %v1031
        %1219 = vmatpush1.msra.mxu0 %v1029
        %1220 = vmatprep.subr.mxu0 %v1035
        %1221 = vmatpush1.msra.mxu0 %v1033
        %1222 = vmatprep.subr.mxu0 %v1039
        %1223 = vmatpush1.msra.mxu0 %v1037
        %1224 = vmatprep.subr.mxu0 %v1043
        %1225 = vmatpush1.msra.mxu0 %v1041
        %1226 = vmatprep.subr.mxu0 %v1047
        %1227 = vmatpush1.msra.mxu0 %v1045
        %1228 = vmatprep.subr.mxu0 %v1051
        %1229 = vmatpush1.msra.mxu0 %v1049
        %1230 = vmatprep.subr.mxu0 %v1055
        %1231 = vmatpush1.msra.mxu0 %v1053
        %1232 = vmatprep.subr.mxu0 %v1059
        %1233 = vmatpush1.msra.mxu0 %v1057
        %1234 = vmatprep.subr.mxu0 %v1063
        %1235 = vmatpush1.msra.mxu0 %v1061
        %1236 = vmatprep.subr.mxu0 %v1067
        %1237 = vmatpush1.msra.mxu0 %v1065
        %1238 = vmatprep.subr.mxu0 %v1071
        %1239 = vmatpush1.msra.mxu0 %v1069
        %1240 = vmatprep.subr.mxu0 %v1075
        %1241 = vmatpush1.msra.mxu0 %v1073
        %1242 = vmatprep.subr.mxu0 %v1079
        %1243 = vmatpush1.msra.mxu0 %v1077
        %1244 = vmatprep.subr.mxu0 %v1083
        %1245 = vmatpush1.msra.mxu0 %v1081
        %1246 = vmatprep.subr.mxu0 %v1087
        %1247 = vmatpush1.msra.mxu0 %v1085
        %1248 = vmatprep.subr.mxu0 %v1091
        %1249 = vmatpush1.msra.mxu0 %v1089
        %1250 = vmatprep.subr.mxu0 %v1095
        %1251 = vmatpush1.msra.mxu0 %v1093
        %1252 = vmatprep.subr.mxu0 %v1099
        %1253 = vmatpush1.msra.mxu0 %v1097
        %1254 = vmatprep.subr.mxu0 %v1103
        %1255 = vmatpush1.msra.mxu0 %v1101
        %1256 = vmatprep.subr.mxu0 %v1107
        %1257 = vmatpush1.msra.mxu0 %v1105
        %1258 = vmatprep.subr.mxu0 %v1111
        %1259 = vmatpush1.msra.mxu0 %v1109
        %1260 = vmatprep.subr.mxu0 %v1115
        %1261 = vmatpush1.msra.mxu0 %v1113
        %1262 = vmatprep.subr.mxu0 %v1119
        %1263 = vmatpush1.msra.mxu0 %v1117
        %1264 = vmatprep.subr.mxu0 %v1123
        %1265 = vmatpush1.msra.mxu0 %v1121
        %1266 = vmatprep.subr.mxu0 %v1127
        %1267 = vmatpush1.msra.mxu0 %v1125
        %1268 = vmatprep.mubr.f32.mxu0 %v433
        %1269 = vmatmul.mubr.f32.gmra.mrb[0].mxu0 %v432
        %v1270 = vpop.f32.mrb[0].mxu0
        %v1271 = vadd.f32 0.0, %v1270
        %v1272 = vpop.f32.mrb[0].mxu0
        %v1273 = vadd.f32 0.0, %v1272
        %1274 = vmatprep.mubr.f32.mxu0 %v435
        %1275 = vmatmul.mubr.f32.gmra.mrb[0].mxu0 %v434
        %v1276 = vpop.f32.mrb[0].mxu0
        %v1277 = vadd.f32 0.0, %v1276
        %v1278 = vpop.f32.mrb[0].mxu0
        %v1279 = vadd.f32 0.0, %v1278
        %1280 = vmatprep.mubr.f32.mxu0 %v437
        %1281 = vmatmul.mubr.f32.gmra.mrb[0].mxu0 %v436
        %v1282 = vpop.f32.mrb[0].mxu0
        %v1283 = vadd.f32 0.0, %v1282
        %v1284 = vpop.f32.mrb[0].mxu0
        %v1285 = vadd.f32 0.0, %v1284
        %1286 = vmatprep.mubr.f32.mxu0 %v439
        %1287 = vmatmul.mubr.f32.gmra.mrb[0].mxu0 %v438
        %v1288 = vpop.f32.mrb[0].mxu0
        %v1289 = vadd.f32 0.0, %v1288
        %v1290 = vpop.f32.mrb[0].mxu0
        %v1291 = vadd.f32 0.0, %v1290
        %1292 = vdwg.mxu0
        %1293 = vmatprep.subr.mxu0 0.0
        %1294 = vmatpush1.msra.mxu0 %v278
        %1295 = vmatprep.subr.mxu0 0.0
        %1296 = vmatpush1.msra.mxu0 %v279
        %1297 = vmatprep.subr.mxu0 0.0
        %1298 = vmatpush1.msra.mxu0 %v280
        %1299 = vmatprep.subr.mxu0 0.0
        %1300 = vmatpush1.msra.mxu0 %v281
        %1301 = vmatprep.subr.mxu0 0.0
        %1302 = vmatpush1.msra.mxu0 %v282
        %1303 = vmatprep.subr.mxu0 0.0
        %1304 = vmatpush1.msra.mxu0 %v283
        %1305 = vmatprep.subr.mxu0 0.0
        %1306 = vmatpush1.msra.mxu0 %v284
        %1307 = vmatprep.subr.mxu0 0.0
        %1308 = vmatpush1.msra.mxu0 %v285
        %1309 = vmatprep.subr.mxu0 0.0
        %1310 = vmatpush1.msra.mxu0 %v286
        %1311 = vmatprep.subr.mxu0 0.0
        %1312 = vmatpush1.msra.mxu0 %v287
        %1313 = vmatprep.subr.mxu0 0.0
        %1314 = vmatpush1.msra.mxu0 %v288
        %1315 = vmatprep.subr.mxu0 0.0
        %1316 = vmatpush1.msra.mxu0 %v289
        %1317 = vmatprep.subr.mxu0 0.0
        %1318 = vmatpush1.msra.mxu0 %v290
        %1319 = vmatprep.subr.mxu0 0.0
        %1320 = vmatpush1.msra.mxu0 %v291
        %1321 = vmatprep.subr.mxu0 0.0
        %1322 = vmatpush1.msra.mxu0 %v292
        %1323 = vmatprep.subr.mxu0 0.0
        %1324 = vmatpush1.msra.mxu0 %v293
        %1325 = vmatprep.subr.mxu0 0.0
        %1326 = vmatpush1.msra.mxu0 %v294
        %1327 = vmatprep.subr.mxu0 0.0
        %1328 = vmatpush1.msra.mxu0 %v295
        %1329 = vmatprep.subr.mxu0 0.0
        %1330 = vmatpush1.msra.mxu0 %v296
        %1331 = vmatprep.subr.mxu0 0.0
        %1332 = vmatpush1.msra.mxu0 %v297
        %1333 = vmatprep.subr.mxu0 0.0
        %1334 = vmatpush1.msra.mxu0 %v298
        %1335 = vmatprep.subr.mxu0 0.0
        %1336 = vmatpush1.msra.mxu0 %v299
        %1337 = vmatprep.subr.mxu0 0.0
        %1338 = vmatpush1.msra.mxu0 %v300
        %1339 = vmatprep.subr.mxu0 0.0
        %1340 = vmatpush1.msra.mxu0 %v301
        %1341 = vmatprep.subr.mxu0 0.0
        %1342 = vmatpush1.msra.mxu0 %v302
        %1343 = vmatprep.subr.mxu0 0.0
        %1344 = vmatpush1.msra.mxu0 %v303
        %1345 = vmatprep.subr.mxu0 0.0
        %1346 = vmatpush1.msra.mxu0 %v304
        %1347 = vmatprep.subr.mxu0 0.0
        %1348 = vmatpush1.msra.mxu0 %v305
        %1349 = vmatprep.subr.mxu0 0.0
        %1350 = vmatpush1.msra.mxu0 %v306
        %1351 = vmatprep.subr.mxu0 0.0
        %1352 = vmatpush1.msra.mxu0 %v307
        %1353 = vmatprep.subr.mxu0 0.0
        %1354 = vmatpush1.msra.mxu0 %v308
        %1355 = vmatprep.subr.mxu0 0.0
        %1356 = vmatpush1.msra.mxu0 %v309
        %1357 = vmatprep.mubr.f32.mxu0 %v433
        %1358 = vmatmul.mubr.f32.gmra.mrb[0].mxu0 %v432
        %v1359 = vpop.f32.mrb[0].mxu0
        %v1360 = vadd.f32 0.0, %v1359
        %v1361 = vpop.f32.mrb[0].mxu0
        %1362 = vmatprep.mubr.f32.mxu0 %v435
        %1363 = vmatmul.mubr.f32.gmra.mrb[0].mxu0 %v434
        %v1364 = vpop.f32.mrb[0].mxu0
        %v1365 = vadd.f32 0.0, %v1364
        %v1366 = vpop.f32.mrb[0].mxu0
        %1367 = vmatprep.mubr.f32.mxu0 %v437
        %1368 = vmatmul.mubr.f32.gmra.mrb[0].mxu0 %v436
        %v1369 = vpop.f32.mrb[0].mxu0
        %v1370 = vadd.f32 0.0, %v1369
        %v1371 = vpop.f32.mrb[0].mxu0
        %1372 = vmatprep.mubr.f32.mxu0 %v439
        %1373 = vmatmul.mubr.f32.gmra.mrb[0].mxu0 %v438
        %v1374 = vpop.f32.mrb[0].mxu0
        %v1375 = vadd.f32 0.0, %v1374
        %v1376 = vpop.f32.mrb[0].mxu0
        %1377 = vdwg.mxu0
        %1378 = vset.pattern.permute.xlu0 0
        %1379 = vperm.xlu0 %1378, %v238
        %v1380 = vpop.permute.xlu0 %1379
        %1382 = vset.pattern.permute.xlu0 0
        %1383 = vperm.xlu0 %1382, %v239
        %v1384 = vpop.permute.xlu0 %1383
        %1386 = vset.pattern.permute.xlu0 0
        %1387 = vperm.xlu0 %1386, %v240
        %v1388 = vpop.permute.xlu0 %1387
        %1390 = vset.pattern.permute.xlu0 0
        %1391 = vperm.xlu0 %1390, %v241
        %v1392 = vpop.permute.xlu0 %1391
        %v1394 = vmul.f32 %v1360, %v1380
        %v1395 = vmul.f32 %v1365, %v1384
        %v1396 = vmul.f32 %v1370, %v1388
        %v1397 = vmul.f32 %v1375, %v1392
        %1398 = vset.pattern.permute.xlu0 1
        %1399 = vperm.xlu0 %1398, %v238
        %v1400 = vpop.permute.xlu0 %1399
        %1402 = vset.pattern.permute.xlu0 1
        %1403 = vperm.xlu0 %1402, %v239
        %v1404 = vpop.permute.xlu0 %1403
        %1406 = vset.pattern.permute.xlu0 1
        %1407 = vperm.xlu0 %1406, %v240
        %v1408 = vpop.permute.xlu0 %1407
        %1410 = vset.pattern.permute.xlu0 1
        %1411 = vperm.xlu0 %1410, %v241
        %v1412 = vpop.permute.xlu0 %1411
        %v1414 = vmul.f32 %v1360, %v1400
        %v1415 = vmul.f32 %v1365, %v1404
        %v1416 = vmul.f32 %v1370, %v1408
        %v1417 = vmul.f32 %v1375, %v1412
        %1422 = vrot.lane.b32.xlu0 %v1414, 120
        %v1423 = vpop.permute.xlu0 %1422
        %1424 = vrot.lane.b32.xlu0 %v1415, 120
        %v1425 = vpop.permute.xlu0 %1424
        %1426 = vrot.lane.b32.xlu0 %v1416, 120
        %v1427 = vpop.permute.xlu0 %1426
        %1428 = vrot.lane.b32.xlu0 %v1417, 120
        %v1429 = vpop.permute.xlu0 %1428
        %v1434 = vadd.f32 %v1394, %v1423
        %v1435 = vadd.f32 %v1395, %v1425
        %v1436 = vadd.f32 %v1396, %v1427
        %v1437 = vadd.f32 %v1397, %v1429
        %v1439 = vsel %vm508, %v1434, 0
        %v1442 = vsel %vm508, %v1435, 0
        %v1445 = vsel %vm508, %v1436, 0
        %v1448 = vsel %vm508, %v1437, 0
        %1450 = vmatprep.subr.mxu0 %v441
        %1451 = vmatpush1.msra.mxu0 %v440
        %1452 = vmatprep.subr.mxu0 0.0
        %1453 = vmatpush1.msra.mxu0 0.0
        %1454 = vmatprep.subr.mxu0 0.0
        %1455 = vmatpush1.msra.mxu0 0.0
        %1456 = vmatprep.subr.mxu0 0.0
        %1457 = vmatpush1.msra.mxu0 0.0
        %1458 = vmatprep.subr.mxu0 0.0
        %1459 = vmatpush1.msra.mxu0 0.0
        %1460 = vmatprep.subr.mxu0 0.0
        %1461 = vmatpush1.msra.mxu0 0.0
        %1462 = vmatprep.subr.mxu0 0.0
        %1463 = vmatpush1.msra.mxu0 0.0
        %1464 = vmatprep.subr.mxu0 0.0
        %1465 = vmatpush1.msra.mxu0 0.0
        %1466 = vmatprep.subr.mxu0 0.0
        %1467 = vmatpush1.msra.mxu0 0.0
        %1468 = vmatprep.subr.mxu0 0.0
        %1469 = vmatpush1.msra.mxu0 0.0
        %1470 = vmatprep.subr.mxu0 0.0
        %1471 = vmatpush1.msra.mxu0 0.0
        %1472 = vmatprep.subr.mxu0 0.0
        %1473 = vmatpush1.msra.mxu0 0.0
        %1474 = vmatprep.subr.mxu0 0.0
        %1475 = vmatpush1.msra.mxu0 0.0
        %1476 = vmatprep.subr.mxu0 0.0
        %1477 = vmatpush1.msra.mxu0 0.0
        %1478 = vmatprep.subr.mxu0 0.0
        %1479 = vmatpush1.msra.mxu0 0.0
        %1480 = vmatprep.subr.mxu0 0.0
        %1481 = vmatpush1.msra.mxu0 0.0
        %1482 = vmatprep.subr.mxu0 0.0
        %1483 = vmatpush1.msra.mxu0 0.0
        %1484 = vmatprep.subr.mxu0 0.0
        %1485 = vmatpush1.msra.mxu0 0.0
        %1486 = vmatprep.subr.mxu0 0.0
        %1487 = vmatpush1.msra.mxu0 0.0
        %1488 = vmatprep.subr.mxu0 0.0
        %1489 = vmatpush1.msra.mxu0 0.0
        %1490 = vmatprep.subr.mxu0 0.0
        %1491 = vmatpush1.msra.mxu0 0.0
        %1492 = vmatprep.subr.mxu0 0.0
        %1493 = vmatpush1.msra.mxu0 0.0
        %1494 = vmatprep.subr.mxu0 0.0
        %1495 = vmatpush1.msra.mxu0 0.0
        %1496 = vmatprep.subr.mxu0 0.0
        %1497 = vmatpush1.msra.mxu0 0.0
        %1498 = vmatprep.subr.mxu0 0.0
        %1499 = vmatpush1.msra.mxu0 0.0
        %1500 = vmatprep.subr.mxu0 0.0
        %1501 = vmatpush1.msra.mxu0 0.0
        %1502 = vmatprep.subr.mxu0 0.0
        %1503 = vmatpush1.msra.mxu0 0.0
        %1504 = vmatprep.subr.mxu0 0.0
        %1505 = vmatpush1.msra.mxu0 0.0
        %1506 = vmatprep.subr.mxu0 0.0
        %1507 = vmatpush1.msra.mxu0 0.0
        %1508 = vmatprep.subr.mxu0 0.0
        %1509 = vmatpush1.msra.mxu0 0.0
        %1510 = vmatprep.subr.mxu0 0.0
        %1511 = vmatpush1.msra.mxu0 0.0
        %1512 = vmatprep.subr.mxu0 0.0
        %1513 = vmatpush1.msra.mxu0 0.0
        %1514 = vmatprep.mubr.f32.mxu0 0.0
        %1515 = vmatmul.mubr.f32.gmra.mrb[0].mxu0 %v1439
        %v1516 = vpop.f32.mrb[0].mxu0
        %v1517 = vadd.f32 0.0, %v1516
        %v1518 = vpop.f32.mrb[0].mxu0
        %v1519 = vadd.f32 0.0, %v1518
        %1520 = vmatprep.mubr.f32.mxu0 0.0
        %1521 = vmatmul.mubr.f32.gmra.mrb[0].mxu0 %v1442
        %v1522 = vpop.f32.mrb[0].mxu0
        %v1523 = vadd.f32 0.0, %v1522
        %v1524 = vpop.f32.mrb[0].mxu0
        %v1525 = vadd.f32 0.0, %v1524
        %1526 = vmatprep.mubr.f32.mxu0 0.0
        %1527 = vmatmul.mubr.f32.gmra.mrb[0].mxu0 %v1445
        %v1528 = vpop.f32.mrb[0].mxu0
        %v1529 = vadd.f32 0.0, %v1528
        %v1530 = vpop.f32.mrb[0].mxu0
        %v1531 = vadd.f32 0.0, %v1530
        %1532 = vmatprep.mubr.f32.mxu0 0.0
        %1533 = vmatmul.mubr.f32.gmra.mrb[0].mxu0 %v1448
        %v1534 = vpop.f32.mrb[0].mxu0
        %v1535 = vadd.f32 0.0, %v1534
        %v1536 = vpop.f32.mrb[0].mxu0
        %v1537 = vadd.f32 0.0, %v1536
        %1538 = vdwg.mxu0
        %v1539 = vmul.f32 %v1271, %v1202
        %v1540 = vmul.f32 %v1273, %v1203
        %v1541 = vmul.f32 %v1277, %v1202
        %v1542 = vmul.f32 %v1279, %v1203
        %v1543 = vmul.f32 %v1283, %v1202
        %v1544 = vmul.f32 %v1285, %v1203
        %v1545 = vmul.f32 %v1289, %v1202
        %v1546 = vmul.f32 %v1291, %v1203
        %v1547 = vmul.f32 %v1539, %v264
        %v1548 = vmul.f32 %v1540, %v264
        %v1549 = vmul.f32 %v1541, %v268
        %v1550 = vmul.f32 %v1542, %v268
        %v1551 = vmul.f32 %v1543, %v272
        %v1552 = vmul.f32 %v1544, %v272
        %v1553 = vmul.f32 %v1545, %v276
        %v1554 = vmul.f32 %v1546, %v276
        %v1555 = vadd.f32 %v1547, %v1517
        %v1556 = vadd.f32 %v1548, %v1519
        %v1557 = vadd.f32 %v1549, %v1523
        %v1558 = vadd.f32 %v1550, %v1525
        %v1559 = vadd.f32 %v1551, %v1529
        %v1560 = vadd.f32 %v1552, %v1531
        %v1561 = vadd.f32 %v1553, %v1535
        %v1562 = vadd.f32 %v1554, %v1537
        %v1563 = vadd.f32 %v1555, %v245
        %v1564 = vadd.f32 %v1556, %v245
        %v1565 = vadd.f32 %v1557, %v250
        %v1566 = vadd.f32 %v1558, %v250
        %v1567 = vadd.f32 %v1559, %v255
        %v1568 = vadd.f32 %v1560, %v255
        %v1569 = vadd.f32 %v1561, %v260
        %v1570 = vadd.f32 %v1562, %v260
        %v1571 = vadd.f32 %v1563, %v310
        %v1572 = vadd.f32 %v1564, %v311
        %v1573 = vadd.f32 %v1565, %v312
        %v1574 = vadd.f32 %v1566, %v313
        %v1575 = vadd.f32 %v1567, %v314
        %v1576 = vadd.f32 %v1568, %v315
        %v1577 = vadd.f32 %v1569, %v316
        %v1578 = vadd.f32 %v1570, %v317
        %1579 = vst [vmem:[%s193] sm:$0xff] %v1571
        %1580 = vst [vmem:[%s193 + $0x8] sm:$0xff] %v1572
        %1581 = vst [vmem:[%s193 + $0x10] sm:$0xff] %v1573
        %1582 = vst [vmem:[%s193 + $0x18] sm:$0xff] %v1574
        %1583 = vst [vmem:[%s193 + $0x20] sm:$0xff] %v1575
        %1584 = vst [vmem:[%s193 + $0x28] sm:$0xff] %v1576
        %1585 = vst [vmem:[%s193 + $0x30] sm:$0xff] %v1577
        %1586 = vst [vmem:[%s193 + $0x38] sm:$0xff] %v1578
        %s1587 = sand.u32 %s115, 1
        %s1588 = scalar_lea.sflag [#allocation3], %s1587
        %s1589 = sand.u32 %s115, 1
        %s1590 = smul.addr %s1589, 64
        %s1591 = scalar_lea.vmem [#allocation2], %s1590
        // Predicated region
        $region37: #{tpu_custom_call.1} parent=35 // pred_check
          %p1592 = pneg %p125
        $region38: #{tpu_custom_call.1} parent=35 // pred_check_branch
          %1594 = sbr.rel (%p1592) target = $region40
        $region39: #{tpu_custom_call.1} parent=35 // pred_region
          %s1595 = smul.u32 4, %s18
          %s1597 = ssub.s32 1024, 1024
          %1598 = vsyncadd %s1588, %s1597
          %s1599 = smul.addr %s1595, 2
          %s1600 = smul.addr %s1599, 128
          %s1601 = scalar_lea.hbm %s4, %s1600
          %s1602 = sshll.u32 %s1591, 4
          %s1603 = int_to_ptr.vmem [resolvable:$true] %s1602
          %1608 = dma.vmem_to_hbm [thread:$0]  %s1603, 1024, %s1601, %s1588, 256, 256, 16
        $region40: #{tpu_custom_call.1} parent=35 // pred_fallthru
          _
      $region36: #{tpu_custom_call.1} parent=5 // pred_fallthru
        _
      %p1609 = scmp.le.s32.totalorder 2, %s13
      // Predicated region
      $region41: #{tpu_custom_call.1} parent=5 // pred_check
        %p1610 = pneg %p1609
      $region42: #{tpu_custom_call.1} parent=5 // pred_check_branch
        %1612 = sbr.rel (%p1610) target = $region44
      $region43: #{tpu_custom_call.1} parent=5 // pred_region
        %s1613 = ssub.s32 %s13, 2
        // Predicated region
        $region45: #{tpu_custom_call.1} parent=43 // pred_check
          %p1614 = pneg %p131
        $region46: #{tpu_custom_call.1} parent=43 // pred_check_branch
          %1616 = sbr.rel (%p1614) target = $region48
        $region47: #{tpu_custom_call.1} parent=43 // pred_region
          %s1617 = sand.u32 %s116, 1
          %s1618 = scalar_lea.sflag [#allocation3], %s1617
          %s1619 = sand.u32 %s116, 1
          %s1620 = smul.addr %s1619, 64
          %s1621 = scalar_lea.vmem [#allocation2], %s1620
          %1622 = dma.done %s1618, 1024
        $region48: #{tpu_custom_call.1} parent=43 // pred_fallthru
          _
      $region44: #{tpu_custom_call.1} parent=5 // pred_fallthru
        _
    $region6: #{tpu_custom_call.1} parent=1 // loop_footer
      %s17 = sadd.s32 1, %s13
    $region7: #{tpu_custom_call.1} parent=1 // loop_footer_branch
      %12 = sbr.rel target = $region3
    $region8: #{tpu_custom_call.1} parent=1 // loop_exit
      _
    %1623 = vsyncpa [#allocation3], 1
    %s1624 = scalar_lea.sflag [#allocation3], 1
    %1625 = vsyncpa %s1624, 1

</llo_original>
